<compile_context>
chip_gen: v7x
topology: tpu7x:2x2x1
jax: 0.10.0
libtpu: 0.0.40
codegen_flags: <defaults>
</compile_context>

<pallas_src>
from math import sqrt

import jax
import jax.numpy as jnp
from jax.experimental import pallas as pl
from jax.experimental.pallas import tpu as pltpu

# ---- Problem config (small, consistent with the module) ----
B = 2          # batch
L = 8          # sequence length
D_MODEL = 32   # d_model
DIM_K = 16     # per-head key/query dim
DIM_V = 16     # per-head value dim
N_HEADS = 4    # heads
NORM_FACT = 1.0 / sqrt(D_MODEL)

HK = N_HEADS * DIM_K    # 64
HV = N_HEADS * DIM_V    # 64
QKV_W = 2 * HK + HV     # 192 packed projection width
IN_W = 2 * D_MODEL + 1  # 65  packed input width ([x | y | 1])


def _mha_kernel(xy1_ref, wqkv_ref, wob_ref, out_ref):
    """Single grid step; everything lives in VMEM.

    xy1_ref  : (B*L, 2*D+1) = (16, 65)   [x | y | 1]
    wqkv_ref : (2*D+1, 192)              [[norm*Wq|Wk|0],[0|0|Wv],[norm*bq|bk|bv]]
    wob_ref  : (HV+1, D) = (65, 32)      [Wo ; bo]
    out_ref  : (B*L, D + H*L) = (16, 64) [output (16,32) | softmax scores (16,32)]
    """
    # One fused MXU pass: Q (pre-scaled) | K | V with biases folded in.
    qkv = jnp.dot(xy1_ref[...], wqkv_ref[...],
                  preferred_element_type=jnp.float32)          # (16, 192)
    # Single transpose of the K block -> K^T; replaces 8 per-head transposes.
    kt = qkv[:, HK:2 * HK].T                                   # (64, 16)
    wob = wob_ref[...]
    wo = wob[:HV, :]                                           # (64, 32)
    bo = wob[HV:, :]                                           # (1, 32)

    ctx_rows = []     # per-batch (L, H*dv) context tiles
    score_rows = []   # per-batch (L, H*L) softmax-score tiles
    # B and N_HEADS are tiny static constants: fully unrolled 2-D tile ops.
    for b in range(B):
        r0 = b * L
        head_ctx = []
        head_sc = []
        for h in range(N_HEADS):
            ck = h * DIM_K
            cv = 2 * HK + h * DIM_V
            qh = qkv[r0:r0 + L, ck:ck + DIM_K]                 # (L, dk), already *norm
            khT = kt[ck:ck + DIM_K, r0:r0 + L]                 # (dk, L)
            vh = qkv[r0:r0 + L, cv:cv + DIM_V]                 # (L, dv)

            s = jnp.dot(qh, khT, preferred_element_type=jnp.float32)   # (L, L)
            # numerically-stable softmax over last axis (torch softmax(dim=-1));
            # exact reciprocal: scores are a user-visible output.
            s = s - jnp.max(s, axis=-1, keepdims=True)
            e = jnp.exp(s)
            p = e / jnp.sum(e, axis=-1, keepdims=True)
            head_sc.append(p)
            head_ctx.append(jnp.dot(p, vh,
                                    preferred_element_type=jnp.float32))  # (L, dv)
        ctx_rows.append(jnp.concatenate(head_ctx, axis=1))     # (L, HV)
        score_rows.append(jnp.concatenate(head_sc, axis=1))    # (L, H*L)

    ctx = jnp.concatenate(ctx_rows, axis=0)                    # (B*L, HV)
    out = jnp.dot(ctx, wo, preferred_element_type=jnp.float32) + bo   # (B*L, D), bo added once
    scores = jnp.concatenate(score_rows, axis=0)               # (B*L, H*L)
    # Single lane-dense store: one output DMA for both results.
    out_ref[...] = jnp.concatenate([out, scores], axis=1)      # (16, 64)


def pack_params(params):
    """One-time parameter transform (outside the hot path):
    fuse Q|K|V weights + biases into one block matrix, fold 1/sqrt(d_model)
    into Wq/bq, and stack bo under Wo."""
    wq, bq, wk, bk, wv, bv, wo, bo = params
    top = jnp.concatenate([wq * NORM_FACT, wk,
                           jnp.zeros((D_MODEL, HV), jnp.float32)], axis=1)   # (32, 192)
    mid = jnp.concatenate([jnp.zeros((D_MODEL, 2 * HK), jnp.float32), wv],
                          axis=1)                                            # (32, 192)
    brow = jnp.concatenate([bq * NORM_FACT, bk, bv], axis=1)                 # (1, 192)
    wqkv = jnp.concatenate([top, mid, brow], axis=0)                         # (65, 192)
    wob = jnp.concatenate([wo, bo], axis=0)                                  # (65, 32)
    return (wqkv, wob)


def multihead_attention(x, y, packed_params, requires_mask=False):
    """x, y: (B, L, D_MODEL) float32. Returns (out (B,L,D), scores (B,H,L,L))."""
    # Upstream masked_fill is non-in-place (a no-op); assert so a future
    # "fix" in the source module doesn't silently diverge.
    assert not requires_mask, "requires_mask=True path not implemented (upstream no-op)"
    wqkv, wob = packed_params
    x2 = x.reshape(B * L, D_MODEL)
    y2 = y.reshape(B * L, D_MODEL)
    ones = jnp.ones((B * L, 1), x.dtype)
    xy1 = jnp.concatenate([x2, y2, ones], axis=1)              # (16, 65)

    vmem = pl.BlockSpec(memory_space=pltpu.MemorySpace.VMEM)
    fused = pl.pallas_call(
        _mha_kernel,
        out_shape=jax.ShapeDtypeStruct((B * L, D_MODEL + N_HEADS * L), jnp.float32),
        in_specs=[vmem, vmem, vmem],
        out_specs=vmem,
    )(xy1, wqkv, wob)

    out = fused[:, :D_MODEL].reshape(B, L, D_MODEL)
    scores = (fused[:, D_MODEL:]
              .reshape(B, L, N_HEADS, L)
              .transpose(0, 2, 1, 3))                          # (B, H, L, L)
    return out, scores


def _reference(x, y, params):
    """Pure-JAX reference mirroring the PyTorch forward exactly."""
    wq, bq, wk, bk, wv, bv, wo, bo = params
    Bq, Lq, _ = x.shape
    Q = (x @ wq + bq).reshape(Bq, Lq, N_HEADS, -1)
    K = (x @ wk + bk).reshape(Bq, Lq, N_HEADS, -1)
    V = (y @ wv + bv).reshape(Bq, Lq, N_HEADS, -1)
    scores = jnp.einsum('blhe,bshe->bhls', Q, K) * NORM_FACT
    scores = jax.nn.softmax(scores, axis=-1)
    out = jnp.einsum('bhls,bshd->blhd', scores, V).reshape(Bq, Lq, -1)
    return out @ wo + bo, scores


def init_params(key):
    ks = jax.random.split(key, 8)
    scale = 0.1
    wq = scale * jax.random.normal(ks[0], (D_MODEL, HK), jnp.float32)
    bq = scale * jax.random.normal(ks[1], (1, HK), jnp.float32)
    wk = scale * jax.random.normal(ks[2], (D_MODEL, HK), jnp.float32)
    bk = scale * jax.random.normal(ks[3], (1, HK), jnp.float32)
    wv = scale * jax.random.normal(ks[4], (D_MODEL, HV), jnp.float32)
    bv = scale * jax.random.normal(ks[5], (1, HV), jnp.float32)
    wo = scale * jax.random.normal(ks[6], (HV, D_MODEL), jnp.float32)
    bo = scale * jax.random.normal(ks[7], (1, D_MODEL), jnp.float32)
    return (wq, bq, wk, bk, wv, bv, wo, bo)


if __name__ == "__main__":
    key = jax.random.PRNGKey(0)
    kx, ky, kp = jax.random.split(key, 3)
    x = jax.random.normal(kx, (B, L, D_MODEL), jnp.float32)
    y = jax.random.normal(ky, (B, L, D_MODEL), jnp.float32)
    params = init_params(kp)
    packed = pack_params(params)   # one-time transform, outside the hot path

    out, scores = multihead_attention(x, y, packed)
    out = jax.block_until_ready(out)
    scores = jax.block_until_ready(scores)

    ref_out, ref_scores = _reference(x, y, params)
    assert out.shape == (B, L, D_MODEL)
    assert scores.shape == (B, N_HEADS, L, L)
    # Exact softmax reciprocal now -> tight tolerances.
    assert jnp.allclose(out, ref_out, atol=1e-4, rtol=1e-4)
    assert jnp.allclose(scores, ref_scores, atol=1e-4, rtol=1e-4)

    print("KERNEL_OK")
</pallas_src>

<mosaic_0001>
module attributes {stable_mosaic.version = 11 : i64} {
  func.func @_mha_kernel(%arg0: memref<16x65xf32, #tpu.memory_space<vmem>>, %arg1: memref<65x192xf32, #tpu.memory_space<vmem>>, %arg2: memref<65x32xf32, #tpu.memory_space<vmem>>, %arg3: memref<16x64xf32, #tpu.memory_space<vmem>>) attributes {dimension_semantics = [], scalar_prefetch = 0 : i64, scratch_operands = 0 : i64, tpu.core_type = #tpu.core_type<tc>} {
    %c0 = arith.constant 0 : index
    %c0_0 = arith.constant 0 : index
    %0 = vector.load %arg0[%c0, %c0_0] : memref<16x65xf32, #tpu.memory_space<vmem>>, vector<16x65xf32>
    %c0_1 = arith.constant 0 : index
    %c0_2 = arith.constant 0 : index
    %1 = vector.load %arg1[%c0_1, %c0_2] : memref<65x192xf32, #tpu.memory_space<vmem>>, vector<65x192xf32>
    %cst = arith.constant dense<0.000000e+00> : vector<16x192xf32>
    %2 = tpu.matmul %0, %1, %cst {dimension_numbers = #tpu.dot_dimension_numbers<[1], [0], [0], [1], [0, 0, 1, 1], [], []>} : vector<16x65xf32>, vector<65x192xf32>, vector<16x192xf32> -> vector<16x192xf32>
    %3 = vector.extract_strided_slice %2 {offsets = [0, 64], sizes = [16, 64], strides = [1, 1]} : vector<16x192xf32> to vector<16x64xf32>
    %4 = tpu.transpose %3, [1, 0] : vector<16x64xf32> -> vector<64x16xf32>
    %c0_3 = arith.constant 0 : index
    %c0_4 = arith.constant 0 : index
    %5 = vector.load %arg2[%c0_3, %c0_4] : memref<65x32xf32, #tpu.memory_space<vmem>>, vector<65x32xf32>
    %6 = vector.extract_strided_slice %5 {offsets = [0, 0], sizes = [64, 32], strides = [1, 1]} : vector<65x32xf32> to vector<64x32xf32>
    %7 = vector.extract_strided_slice %5 {offsets = [64, 0], sizes = [1, 32], strides = [1, 1]} : vector<65x32xf32> to vector<1x32xf32>
    %8 = vector.extract_strided_slice %2 {offsets = [0, 0], sizes = [8, 16], strides = [1, 1]} : vector<16x192xf32> to vector<8x16xf32>
    %9 = vector.extract_strided_slice %4 {offsets = [0, 0], sizes = [16, 8], strides = [1, 1]} : vector<64x16xf32> to vector<16x8xf32>
    %10 = vector.extract_strided_slice %2 {offsets = [0, 128], sizes = [8, 16], strides = [1, 1]} : vector<16x192xf32> to vector<8x16xf32>
    %cst_5 = arith.constant dense<0.000000e+00> : vector<8x8xf32>
    %11 = tpu.matmul %8, %9, %cst_5 {dimension_numbers = #tpu.dot_dimension_numbers<[1], [0], [0], [1], [0, 0, 1, 1], [], []>} : vector<8x16xf32>, vector<16x8xf32>, vector<8x8xf32> -> vector<8x8xf32>
    %cst_6 = arith.constant dense<0xFF800000> : vector<8xf32>
    %12 = vector.multi_reduction <maximumf>, %11, %cst_6 [1] : vector<8x8xf32> to vector<8xf32>
    %13 = vector.shape_cast %12 : vector<8xf32> to vector<8x1xf32>
    %14 = vector.broadcast %13 : vector<8x1xf32> to vector<8x8xf32>
    %15 = arith.subf %11, %14 : vector<8x8xf32>
    %16 = math.exp %15 : vector<8x8xf32>
    %cst_7 = arith.constant dense<0.000000e+00> : vector<8xf32>
    %17 = vector.multi_reduction <add>, %16, %cst_7 [1] : vector<8x8xf32> to vector<8xf32>
    %18 = vector.shape_cast %17 : vector<8xf32> to vector<8x1xf32>
    %19 = vector.broadcast %18 : vector<8x1xf32> to vector<8x8xf32>
    %20 = arith.divf %16, %19 : vector<8x8xf32>
    %cst_8 = arith.constant dense<0.000000e+00> : vector<8x16xf32>
    %21 = tpu.matmul %20, %10, %cst_8 {dimension_numbers = #tpu.dot_dimension_numbers<[1], [0], [0], [1], [0, 0, 1, 1], [], []>} : vector<8x8xf32>, vector<8x16xf32>, vector<8x16xf32> -> vector<8x16xf32>
    %22 = vector.extract_strided_slice %2 {offsets = [0, 16], sizes = [8, 16], strides = [1, 1]} : vector<16x192xf32> to vector<8x16xf32>
    %23 = vector.extract_strided_slice %4 {offsets = [16, 0], sizes = [16, 8], strides = [1, 1]} : vector<64x16xf32> to vector<16x8xf32>
    %24 = vector.extract_strided_slice %2 {offsets = [0, 144], sizes = [8, 16], strides = [1, 1]} : vector<16x192xf32> to vector<8x16xf32>
    %cst_9 = arith.constant dense<0.000000e+00> : vector<8x8xf32>
    %25 = tpu.matmul %22, %23, %cst_9 {dimension_numbers = #tpu.dot_dimension_numbers<[1], [0], [0], [1], [0, 0, 1, 1], [], []>} : vector<8x16xf32>, vector<16x8xf32>, vector<8x8xf32> -> vector<8x8xf32>
    %cst_10 = arith.constant dense<0xFF800000> : vector<8xf32>
    %26 = vector.multi_reduction <maximumf>, %25, %cst_10 [1] : vector<8x8xf32> to vector<8xf32>
    %27 = vector.shape_cast %26 : vector<8xf32> to vector<8x1xf32>
    %28 = vector.broadcast %27 : vector<8x1xf32> to vector<8x8xf32>
    %29 = arith.subf %25, %28 : vector<8x8xf32>
    %30 = math.exp %29 : vector<8x8xf32>
    %cst_11 = arith.constant dense<0.000000e+00> : vector<8xf32>
    %31 = vector.multi_reduction <add>, %30, %cst_11 [1] : vector<8x8xf32> to vector<8xf32>
    %32 = vector.shape_cast %31 : vector<8xf32> to vector<8x1xf32>
    %33 = vector.broadcast %32 : vector<8x1xf32> to vector<8x8xf32>
    %34 = arith.divf %30, %33 : vector<8x8xf32>
    %cst_12 = arith.constant dense<0.000000e+00> : vector<8x16xf32>
    %35 = tpu.matmul %34, %24, %cst_12 {dimension_numbers = #tpu.dot_dimension_numbers<[1], [0], [0], [1], [0, 0, 1, 1], [], []>} : vector<8x8xf32>, vector<8x16xf32>, vector<8x16xf32> -> vector<8x16xf32>
    %36 = vector.extract_strided_slice %2 {offsets = [0, 32], sizes = [8, 16], strides = [1, 1]} : vector<16x192xf32> to vector<8x16xf32>
    %37 = vector.extract_strided_slice %4 {offsets = [32, 0], sizes = [16, 8], strides = [1, 1]} : vector<64x16xf32> to vector<16x8xf32>
    %38 = vector.extract_strided_slice %2 {offsets = [0, 160], sizes = [8, 16], strides = [1, 1]} : vector<16x192xf32> to vector<8x16xf32>
    %cst_13 = arith.constant dense<0.000000e+00> : vector<8x8xf32>
    %39 = tpu.matmul %36, %37, %cst_13 {dimension_numbers = #tpu.dot_dimension_numbers<[1], [0], [0], [1], [0, 0, 1, 1], [], []>} : vector<8x16xf32>, vector<16x8xf32>, vector<8x8xf32> -> vector<8x8xf32>
    %cst_14 = arith.constant dense<0xFF800000> : vector<8xf32>
    %40 = vector.multi_reduction <maximumf>, %39, %cst_14 [1] : vector<8x8xf32> to vector<8xf32>
    %41 = vector.shape_cast %40 : vector<8xf32> to vector<8x1xf32>
    %42 = vector.broadcast %41 : vector<8x1xf32> to vector<8x8xf32>
    %43 = arith.subf %39, %42 : vector<8x8xf32>
    %44 = math.exp %43 : vector<8x8xf32>
    %cst_15 = arith.constant dense<0.000000e+00> : vector<8xf32>
    %45 = vector.multi_reduction <add>, %44, %cst_15 [1] : vector<8x8xf32> to vector<8xf32>
    %46 = vector.shape_cast %45 : vector<8xf32> to vector<8x1xf32>
    %47 = vector.broadcast %46 : vector<8x1xf32> to vector<8x8xf32>
    %48 = arith.divf %44, %47 : vector<8x8xf32>
    %cst_16 = arith.constant dense<0.000000e+00> : vector<8x16xf32>
    %49 = tpu.matmul %48, %38, %cst_16 {dimension_numbers = #tpu.dot_dimension_numbers<[1], [0], [0], [1], [0, 0, 1, 1], [], []>} : vector<8x8xf32>, vector<8x16xf32>, vector<8x16xf32> -> vector<8x16xf32>
    %50 = vector.extract_strided_slice %2 {offsets = [0, 48], sizes = [8, 16], strides = [1, 1]} : vector<16x192xf32> to vector<8x16xf32>
    %51 = vector.extract_strided_slice %4 {offsets = [48, 0], sizes = [16, 8], strides = [1, 1]} : vector<64x16xf32> to vector<16x8xf32>
    %52 = vector.extract_strided_slice %2 {offsets = [0, 176], sizes = [8, 16], strides = [1, 1]} : vector<16x192xf32> to vector<8x16xf32>
    %cst_17 = arith.constant dense<0.000000e+00> : vector<8x8xf32>
    %53 = tpu.matmul %50, %51, %cst_17 {dimension_numbers = #tpu.dot_dimension_numbers<[1], [0], [0], [1], [0, 0, 1, 1], [], []>} : vector<8x16xf32>, vector<16x8xf32>, vector<8x8xf32> -> vector<8x8xf32>
    %cst_18 = arith.constant dense<0xFF800000> : vector<8xf32>
    %54 = vector.multi_reduction <maximumf>, %53, %cst_18 [1] : vector<8x8xf32> to vector<8xf32>
    %55 = vector.shape_cast %54 : vector<8xf32> to vector<8x1xf32>
    %56 = vector.broadcast %55 : vector<8x1xf32> to vector<8x8xf32>
    %57 = arith.subf %53, %56 : vector<8x8xf32>
    %58 = math.exp %57 : vector<8x8xf32>
    %cst_19 = arith.constant dense<0.000000e+00> : vector<8xf32>
    %59 = vector.multi_reduction <add>, %58, %cst_19 [1] : vector<8x8xf32> to vector<8xf32>
    %60 = vector.shape_cast %59 : vector<8xf32> to vector<8x1xf32>
    %61 = vector.broadcast %60 : vector<8x1xf32> to vector<8x8xf32>
    %62 = arith.divf %58, %61 : vector<8x8xf32>
    %cst_20 = arith.constant dense<0.000000e+00> : vector<8x16xf32>
    %63 = tpu.matmul %62, %52, %cst_20 {dimension_numbers = #tpu.dot_dimension_numbers<[1], [0], [0], [1], [0, 0, 1, 1], [], []>} : vector<8x8xf32>, vector<8x16xf32>, vector<8x16xf32> -> vector<8x16xf32>
    %64 = tpu.concatenate %21, %35, %49, %63 in 1 : vector<8x16xf32>, vector<8x16xf32>, vector<8x16xf32>, vector<8x16xf32> -> vector<8x64xf32>
    %65 = tpu.concatenate %20, %34, %48, %62 in 1 : vector<8x8xf32>, vector<8x8xf32>, vector<8x8xf32>, vector<8x8xf32> -> vector<8x32xf32>
    %66 = vector.extract_strided_slice %2 {offsets = [8, 0], sizes = [8, 16], strides = [1, 1]} : vector<16x192xf32> to vector<8x16xf32>
    %67 = vector.extract_strided_slice %4 {offsets = [0, 8], sizes = [16, 8], strides = [1, 1]} : vector<64x16xf32> to vector<16x8xf32>
    %68 = vector.extract_strided_slice %2 {offsets = [8, 128], sizes = [8, 16], strides = [1, 1]} : vector<16x192xf32> to vector<8x16xf32>
    %cst_21 = arith.constant dense<0.000000e+00> : vector<8x8xf32>
    %69 = tpu.matmul %66, %67, %cst_21 {dimension_numbers = #tpu.dot_dimension_numbers<[1], [0], [0], [1], [0, 0, 1, 1], [], []>} : vector<8x16xf32>, vector<16x8xf32>, vector<8x8xf32> -> vector<8x8xf32>
    %cst_22 = arith.constant dense<0xFF800000> : vector<8xf32>
    %70 = vector.multi_reduction <maximumf>, %69, %cst_22 [1] : vector<8x8xf32> to vector<8xf32>
    %71 = vector.shape_cast %70 : vector<8xf32> to vector<8x1xf32>
    %72 = vector.broadcast %71 : vector<8x1xf32> to vector<8x8xf32>
    %73 = arith.subf %69, %72 : vector<8x8xf32>
    %74 = math.exp %73 : vector<8x8xf32>
    %cst_23 = arith.constant dense<0.000000e+00> : vector<8xf32>
    %75 = vector.multi_reduction <add>, %74, %cst_23 [1] : vector<8x8xf32> to vector<8xf32>
    %76 = vector.shape_cast %75 : vector<8xf32> to vector<8x1xf32>
    %77 = vector.broadcast %76 : vector<8x1xf32> to vector<8x8xf32>
    %78 = arith.divf %74, %77 : vector<8x8xf32>
    %cst_24 = arith.constant dense<0.000000e+00> : vector<8x16xf32>
    %79 = tpu.matmul %78, %68, %cst_24 {dimension_numbers = #tpu.dot_dimension_numbers<[1], [0], [0], [1], [0, 0, 1, 1], [], []>} : vector<8x8xf32>, vector<8x16xf32>, vector<8x16xf32> -> vector<8x16xf32>
    %80 = vector.extract_strided_slice %2 {offsets = [8, 16], sizes = [8, 16], strides = [1, 1]} : vector<16x192xf32> to vector<8x16xf32>
    %81 = vector.extract_strided_slice %4 {offsets = [16, 8], sizes = [16, 8], strides = [1, 1]} : vector<64x16xf32> to vector<16x8xf32>
    %82 = vector.extract_strided_slice %2 {offsets = [8, 144], sizes = [8, 16], strides = [1, 1]} : vector<16x192xf32> to vector<8x16xf32>
    %cst_25 = arith.constant dense<0.000000e+00> : vector<8x8xf32>
    %83 = tpu.matmul %80, %81, %cst_25 {dimension_numbers = #tpu.dot_dimension_numbers<[1], [0], [0], [1], [0, 0, 1, 1], [], []>} : vector<8x16xf32>, vector<16x8xf32>, vector<8x8xf32> -> vector<8x8xf32>
    %cst_26 = arith.constant dense<0xFF800000> : vector<8xf32>
    %84 = vector.multi_reduction <maximumf>, %83, %cst_26 [1] : vector<8x8xf32> to vector<8xf32>
    %85 = vector.shape_cast %84 : vector<8xf32> to vector<8x1xf32>
    %86 = vector.broadcast %85 : vector<8x1xf32> to vector<8x8xf32>
    %87 = arith.subf %83, %86 : vector<8x8xf32>
    %88 = math.exp %87 : vector<8x8xf32>
    %cst_27 = arith.constant dense<0.000000e+00> : vector<8xf32>
    %89 = vector.multi_reduction <add>, %88, %cst_27 [1] : vector<8x8xf32> to vector<8xf32>
    %90 = vector.shape_cast %89 : vector<8xf32> to vector<8x1xf32>
    %91 = vector.broadcast %90 : vector<8x1xf32> to vector<8x8xf32>
    %92 = arith.divf %88, %91 : vector<8x8xf32>
    %cst_28 = arith.constant dense<0.000000e+00> : vector<8x16xf32>
    %93 = tpu.matmul %92, %82, %cst_28 {dimension_numbers = #tpu.dot_dimension_numbers<[1], [0], [0], [1], [0, 0, 1, 1], [], []>} : vector<8x8xf32>, vector<8x16xf32>, vector<8x16xf32> -> vector<8x16xf32>
    %94 = vector.extract_strided_slice %2 {offsets = [8, 32], sizes = [8, 16], strides = [1, 1]} : vector<16x192xf32> to vector<8x16xf32>
    %95 = vector.extract_strided_slice %4 {offsets = [32, 8], sizes = [16, 8], strides = [1, 1]} : vector<64x16xf32> to vector<16x8xf32>
    %96 = vector.extract_strided_slice %2 {offsets = [8, 160], sizes = [8, 16], strides = [1, 1]} : vector<16x192xf32> to vector<8x16xf32>
    %cst_29 = arith.constant dense<0.000000e+00> : vector<8x8xf32>
    %97 = tpu.matmul %94, %95, %cst_29 {dimension_numbers = #tpu.dot_dimension_numbers<[1], [0], [0], [1], [0, 0, 1, 1], [], []>} : vector<8x16xf32>, vector<16x8xf32>, vector<8x8xf32> -> vector<8x8xf32>
    %cst_30 = arith.constant dense<0xFF800000> : vector<8xf32>
    %98 = vector.multi_reduction <maximumf>, %97, %cst_30 [1] : vector<8x8xf32> to vector<8xf32>
    %99 = vector.shape_cast %98 : vector<8xf32> to vector<8x1xf32>
    %100 = vector.broadcast %99 : vector<8x1xf32> to vector<8x8xf32>
    %101 = arith.subf %97, %100 : vector<8x8xf32>
    %102 = math.exp %101 : vector<8x8xf32>
    %cst_31 = arith.constant dense<0.000000e+00> : vector<8xf32>
    %103 = vector.multi_reduction <add>, %102, %cst_31 [1] : vector<8x8xf32> to vector<8xf32>
    %104 = vector.shape_cast %103 : vector<8xf32> to vector<8x1xf32>
    %105 = vector.broadcast %104 : vector<8x1xf32> to vector<8x8xf32>
    %106 = arith.divf %102, %105 : vector<8x8xf32>
    %cst_32 = arith.constant dense<0.000000e+00> : vector<8x16xf32>
    %107 = tpu.matmul %106, %96, %cst_32 {dimension_numbers = #tpu.dot_dimension_numbers<[1], [0], [0], [1], [0, 0, 1, 1], [], []>} : vector<8x8xf32>, vector<8x16xf32>, vector<8x16xf32> -> vector<8x16xf32>
    %108 = vector.extract_strided_slice %2 {offsets = [8, 48], sizes = [8, 16], strides = [1, 1]} : vector<16x192xf32> to vector<8x16xf32>
    %109 = vector.extract_strided_slice %4 {offsets = [48, 8], sizes = [16, 8], strides = [1, 1]} : vector<64x16xf32> to vector<16x8xf32>
    %110 = vector.extract_strided_slice %2 {offsets = [8, 176], sizes = [8, 16], strides = [1, 1]} : vector<16x192xf32> to vector<8x16xf32>
    %cst_33 = arith.constant dense<0.000000e+00> : vector<8x8xf32>
    %111 = tpu.matmul %108, %109, %cst_33 {dimension_numbers = #tpu.dot_dimension_numbers<[1], [0], [0], [1], [0, 0, 1, 1], [], []>} : vector<8x16xf32>, vector<16x8xf32>, vector<8x8xf32> -> vector<8x8xf32>
    %cst_34 = arith.constant dense<0xFF800000> : vector<8xf32>
    %112 = vector.multi_reduction <maximumf>, %111, %cst_34 [1] : vector<8x8xf32> to vector<8xf32>
    %113 = vector.shape_cast %112 : vector<8xf32> to vector<8x1xf32>
    %114 = vector.broadcast %113 : vector<8x1xf32> to vector<8x8xf32>
    %115 = arith.subf %111, %114 : vector<8x8xf32>
    %116 = math.exp %115 : vector<8x8xf32>
    %cst_35 = arith.constant dense<0.000000e+00> : vector<8xf32>
    %117 = vector.multi_reduction <add>, %116, %cst_35 [1] : vector<8x8xf32> to vector<8xf32>
    %118 = vector.shape_cast %117 : vector<8xf32> to vector<8x1xf32>
    %119 = vector.broadcast %118 : vector<8x1xf32> to vector<8x8xf32>
    %120 = arith.divf %116, %119 : vector<8x8xf32>
    %cst_36 = arith.constant dense<0.000000e+00> : vector<8x16xf32>
    %121 = tpu.matmul %120, %110, %cst_36 {dimension_numbers = #tpu.dot_dimension_numbers<[1], [0], [0], [1], [0, 0, 1, 1], [], []>} : vector<8x8xf32>, vector<8x16xf32>, vector<8x16xf32> -> vector<8x16xf32>
    %122 = tpu.concatenate %79, %93, %107, %121 in 1 : vector<8x16xf32>, vector<8x16xf32>, vector<8x16xf32>, vector<8x16xf32> -> vector<8x64xf32>
    %123 = tpu.concatenate %78, %92, %106, %120 in 1 : vector<8x8xf32>, vector<8x8xf32>, vector<8x8xf32>, vector<8x8xf32> -> vector<8x32xf32>
    %124 = tpu.concatenate %64, %122 in 0 : vector<8x64xf32>, vector<8x64xf32> -> vector<16x64xf32>
    %cst_37 = arith.constant dense<0.000000e+00> : vector<16x32xf32>
    %125 = tpu.matmul %124, %6, %cst_37 {dimension_numbers = #tpu.dot_dimension_numbers<[1], [0], [0], [1], [0, 0, 1, 1], [], []>} : vector<16x64xf32>, vector<64x32xf32>, vector<16x32xf32> -> vector<16x32xf32>
    %126 = vector.broadcast %7 : vector<1x32xf32> to vector<16x32xf32>
    %127 = arith.addf %125, %126 : vector<16x32xf32>
    %128 = tpu.concatenate %65, %123 in 0 : vector<8x32xf32>, vector<8x32xf32> -> vector<16x32xf32>
    %129 = tpu.concatenate %127, %128 in 1 : vector<16x32xf32>, vector<16x32xf32> -> vector<16x64xf32>
    %c0_38 = arith.constant 0 : index
    %c0_39 = arith.constant 0 : index
    %130 = vector.load %arg3[%c0_38, %c0_39] : memref<16x64xf32, #tpu.memory_space<vmem>>, vector<16x64xf32>
    tpu.vector_store %arg3[%c0_38, %c0_39], %129 {strides = array<i32>} : memref<16x64xf32, #tpu.memory_space<vmem>>, vector<16x64xf32>,
    return
  }
}

</mosaic_0001>

<llo_original>
// kernel: tpu_custom_call.1
$region0: #{tpu_custom_call.1}
  #allocation0 [shape = 'u32[]', space=smem, size = 0x4, offset = 0x4, fixed_abs, tag = 'smem constant byte address 0x4 - core index']
  #allocation1 [shape = 'u32[144,128]{1,0:T(1,128)}', space=vmem, size = 0x12000, scoped, tag = 'internal scratch']
  %s0 = inlined_call_operand.vmem [shape: f32[16,65], index: 0, kind: input, shape index: {}]
  %s1 = inlined_call_operand.hbm [shape: f32[65,192], index: 1, kind: input, shape index: {}]
  %s2 = inlined_call_operand.vmem [shape: f32[65,32], index: 2, kind: input, shape index: {}]
  %s3 = inlined_call_operand.hbm [shape: f32[16,64], index: 3, kind: output, shape index: {}]
  %s4 = sld [smem:[#allocation0]]
  $region26: #{tpu_custom_call.1} parent=0
    _
  %s6 = ssub.s32 1, %s4
  %s7 = scalar_select 0, %s6, %s4
  $region1: #{tpu_custom_call.1} parent=0
    #allocation2 [shape = 'u8[73728]{0}', space=vmem, size = 0x12000, scoped, tag = 'input window, operand 1, single buffered']
    #allocation3 [shape = 's32[1]{0}', space=sflag, size = 0x4, scoped, tag = 'scoped memory for tpu_custom_call.1']
    #allocation4 [shape = 's32[1]{0}', space=sflag, size = 0x4, scoped, tag = 'scoped memory for tpu_custom_call.1']
    #allocation5 [shape = 'u8[8192]{0}', space=vmem, size = 0x2000, scoped, tag = 'output window, operand 0, single buffered']
    %8 = vsyncpa [#allocation3], 0
    %9 = vsyncpa [#allocation4], 0
    // Predicated region
    $region2: #{tpu_custom_call.1} parent=1 // pred_check
      _
    $region3: #{tpu_custom_call.1} parent=1 // pred_check_branch
      %11 = sbr.rel (0) target = $region5
    $region4: #{tpu_custom_call.1} parent=1 // pred_region
      _
    $region5: #{tpu_custom_call.1} parent=1 // pred_fallthru
      _
    // Predicated region
    $region6: #{tpu_custom_call.1} parent=1 // pred_check
      _
    $region7: #{tpu_custom_call.1} parent=1 // pred_check_branch
      %13 = sbr.rel (0) target = $region9
    $region8: #{tpu_custom_call.1} parent=1 // pred_region
      %s15 = ssub.s32 2304, 2304
      %16 = vsyncadd [#allocation3], %s15
      %s17 = sshll.u32 [#allocation2], 4
      %s18 = int_to_ptr.vmem [resolvable:$true] %s17
      %23 = dma.hbm_to_vmem [thread:$0]  %s1, 2304, %s18, [#allocation3], 256, 256, 16
    $region9: #{tpu_custom_call.1} parent=1 // pred_fallthru
      _
    // Predicated region
    $region10: #{tpu_custom_call.1} parent=1 // pred_check
      _
    $region11: #{tpu_custom_call.1} parent=1 // pred_check_branch
      %25 = sbr.rel (0) target = $region13
    $region12: #{tpu_custom_call.1} parent=1 // pred_region
      _
    $region13: #{tpu_custom_call.1} parent=1 // pred_fallthru
      _
    // Predicated region
    $region14: #{tpu_custom_call.1} parent=1 // pred_check
      _
    $region15: #{tpu_custom_call.1} parent=1 // pred_check_branch
      %27 = sbr.rel (0) target = $region17
    $region16: #{tpu_custom_call.1} parent=1 // pred_region
      %28 = dma.done [#allocation3], 2304
    $region17: #{tpu_custom_call.1} parent=1 // pred_fallthru
      _
    %v29 = vld [vmem:[%s0] sm:$0xff]
    %v30 = vld [vmem:[%s0 + $0x8] sm:$0xff]
    %v31 = vld [vmem:[#allocation2] sm:$0xff]
    %v32 = vld [vmem:[#allocation2 + $0x8] sm:$0xff]
    %v33 = vld [vmem:[#allocation2 + $0x10] sm:$0xff]
    %v34 = vld [vmem:[#allocation2 + $0x18] sm:$0xff]
    %v35 = vld [vmem:[#allocation2 + $0x20] sm:$0xff]
    %v36 = vld [vmem:[#allocation2 + $0x28] sm:$0xff]
    %v37 = vld [vmem:[#allocation2 + $0x30] sm:$0xff]
    %v38 = vld [vmem:[#allocation2 + $0x38] sm:$0xff]
    %v39 = vld [vmem:[#allocation2 + $0x40] sm:$0xff]
    %v40 = vld [vmem:[#allocation2 + $0x48] sm:$0xff]
    %v41 = vld [vmem:[#allocation2 + $0x50] sm:$0xff]
    %v42 = vld [vmem:[#allocation2 + $0x58] sm:$0xff]
    %v43 = vld [vmem:[#allocation2 + $0x60] sm:$0xff]
    %v44 = vld [vmem:[#allocation2 + $0x68] sm:$0xff]
    %v45 = vld [vmem:[#allocation2 + $0x70] sm:$0xff]
    %v46 = vld [vmem:[#allocation2 + $0x78] sm:$0xff]
    %v47 = vld [vmem:[#allocation2 + $0x80] sm:$0x1]
    %v48 = vld [vmem:[#allocation2 + $0x88] sm:$0x1]
    %vm49 = vcmask 531456
    %v51 = vsel %vm49, %v29, 0
    %v54 = vsel %vm49, %v30, 0
    %vm56 = vcmask 1040384
    %v58 = vsel %vm56, %v47, 0
    %v61 = vsel %vm56, %v48, 0
    %63 = vmatprep.subr.mxu0 %v32
    %64 = vmatpush1.msra.mxu0 %v31
    %65 = vmatprep.subr.mxu0 %v34
    %66 = vmatpush1.msra.mxu0 %v33
    %67 = vmatprep.subr.mxu0 %v36
    %68 = vmatpush1.msra.mxu0 %v35
    %69 = vmatprep.subr.mxu0 %v38
    %70 = vmatpush1.msra.mxu0 %v37
    %71 = vmatprep.subr.mxu0 %v40
    %72 = vmatpush1.msra.mxu0 %v39
    %73 = vmatprep.subr.mxu0 %v42
    %74 = vmatpush1.msra.mxu0 %v41
    %75 = vmatprep.subr.mxu0 %v44
    %76 = vmatpush1.msra.mxu0 %v43
    %77 = vmatprep.subr.mxu0 %v46
    %78 = vmatpush1.msra.mxu0 %v45
    %79 = vmatprep.subr.mxu0 %v61
    %80 = vmatpush1.msra.mxu0 %v58
    %81 = vmatprep.subr.mxu0 0.0
    %82 = vmatpush1.msra.mxu0 0.0
    %83 = vmatprep.subr.mxu0 0.0
    %84 = vmatpush1.msra.mxu0 0.0
    %85 = vmatprep.subr.mxu0 0.0
    %86 = vmatpush1.msra.mxu0 0.0
    %87 = vmatprep.subr.mxu0 0.0
    %88 = vmatpush1.msra.mxu0 0.0
    %89 = vmatprep.subr.mxu0 0.0
    %90 = vmatpush1.msra.mxu0 0.0
    %91 = vmatprep.subr.mxu0 0.0
    %92 = vmatpush1.msra.mxu0 0.0
    %93 = vmatprep.subr.mxu0 0.0
    %94 = vmatpush1.msra.mxu0 0.0
    %95 = vmatprep.subr.mxu0 0.0
    %96 = vmatpush1.msra.mxu0 0.0
    %97 = vmatprep.subr.mxu0 0.0
    %98 = vmatpush1.msra.mxu0 0.0
    %99 = vmatprep.subr.mxu0 0.0
    %100 = vmatpush1.msra.mxu0 0.0
    %101 = vmatprep.subr.mxu0 0.0
    %102 = vmatpush1.msra.mxu0 0.0
    %103 = vmatprep.subr.mxu0 0.0
    %104 = vmatpush1.msra.mxu0 0.0
    %105 = vmatprep.subr.mxu0 0.0
    %106 = vmatpush1.msra.mxu0 0.0
    %107 = vmatprep.subr.mxu0 0.0
    %108 = vmatpush1.msra.mxu0 0.0
    %109 = vmatprep.subr.mxu0 0.0
    %110 = vmatpush1.msra.mxu0 0.0
    %111 = vmatprep.subr.mxu0 0.0
    %112 = vmatpush1.msra.mxu0 0.0
    %113 = vmatprep.subr.mxu0 0.0
    %114 = vmatpush1.msra.mxu0 0.0
    %115 = vmatprep.subr.mxu0 0.0
    %116 = vmatpush1.msra.mxu0 0.0
    %117 = vmatprep.subr.mxu0 0.0
    %118 = vmatpush1.msra.mxu0 0.0
    %119 = vmatprep.subr.mxu0 0.0
    %120 = vmatpush1.msra.mxu0 0.0
    %121 = vmatprep.subr.mxu0 0.0
    %122 = vmatpush1.msra.mxu0 0.0
    %123 = vmatprep.subr.mxu0 0.0
    %124 = vmatpush1.msra.mxu0 0.0
    %125 = vmatprep.subr.mxu0 0.0
    %126 = vmatpush1.msra.mxu0 0.0
    %127 = vmatprep.mubr.f32.mxu0 0.0
    %128 = vmatmul.mubr.f32.gmra.mrb[0].mxu0 %v51
    %v129 = vpop.f32.mrb[0].mxu0
    %v130 = vadd.f32 0.0, %v129
    %v131 = vpop.f32.mrb[0].mxu0
    %v132 = vadd.f32 0.0, %v131
    %133 = vmatprep.mubr.f32.mxu0 0.0
    %134 = vmatmul.mubr.f32.gmra.mrb[0].mxu0 %v54
    %v135 = vpop.f32.mrb[0].mxu0
    %v136 = vadd.f32 0.0, %v135
    %v137 = vpop.f32.mrb[0].mxu0
    %v138 = vadd.f32 0.0, %v137
    %139 = vdwg.mxu0
    %v140 = vld [vmem:[%s2] sm:$0xff]
    %v141 = vld [vmem:[%s2 + $0x8] sm:$0xff]
    %v142 = vld [vmem:[%s2 + $0x10] sm:$0xff]
    %v143 = vld [vmem:[%s2 + $0x18] sm:$0xff]
    %v144 = vld [vmem:[%s2 + $0x20] sm:$0xff]
    %v145 = vld [vmem:[%s2 + $0x28] sm:$0xff]
    %v146 = vld [vmem:[%s2 + $0x30] sm:$0xff]
    %v147 = vld [vmem:[%s2 + $0x38] sm:$0xff]
    %v148 = vld [vmem:[%s2 + $0x40] sm:$0x1]
    %150 = vrot.lane.b32.xlu0 %v130, 64
    %v151 = vpop.permute.xlu0 %150
    %vm152 = vcmask 130048
    %v153 = vsel %vm152, %v130, 0
    %v155 = vsel %vm152, %v151, 0
    %157 = vmatprep.subr.mxu0 0.0
    %158 = vmatpush1.xpose.msra.mxu0 %v155
    %159 = vmatprep.subr.mxu0 0.0
    %160 = vmatpush1.xpose.msra.mxu0 0.0
    %161 = vmatprep.subr.mxu0 0.0
    %162 = vmatpush1.xpose.msra.mxu0 0.0
    %163 = vmatprep.subr.mxu0 0.0
    %164 = vmatpush1.xpose.msra.mxu0 0.0
    %165 = vmatprep.subr.mxu0 0.0
    %166 = vmatpush1.xpose.msra.mxu0 0.0
    %167 = vmatprep.subr.mxu0 0.0
    %168 = vmatpush1.xpose.msra.mxu0 0.0
    %169 = vmatprep.subr.mxu0 0.0
    %170 = vmatpush1.xpose.msra.mxu0 0.0
    %171 = vmatprep.subr.mxu0 0.0
    %172 = vmatpush1.xpose.msra.mxu0 0.0
    %173 = vmatprep.subr.mxu0 0.0
    %174 = vmatpush1.xpose.msra.mxu0 0.0
    %175 = vmatprep.subr.mxu0 0.0
    %176 = vmatpush1.xpose.msra.mxu0 0.0
    %177 = vmatprep.subr.mxu0 0.0
    %178 = vmatpush1.xpose.msra.mxu0 0.0
    %179 = vmatprep.subr.mxu0 0.0
    %180 = vmatpush1.xpose.msra.mxu0 0.0
    %181 = vmatprep.subr.mxu0 0.0
    %182 = vmatpush1.xpose.msra.mxu0 0.0
    %183 = vmatprep.subr.mxu0 0.0
    %184 = vmatpush1.xpose.msra.mxu0 0.0
    %185 = vmatprep.subr.mxu0 0.0
    %186 = vmatpush1.xpose.msra.mxu0 0.0
    %187 = vmatprep.subr.mxu0 0.0
    %188 = vmatpush1.xpose.msra.mxu0 0.0
    %189 = vmatprep.subr.mxu0 0.0
    %190 = vmatpush1.xpose.msra.mxu0 0.0
    %191 = vmatprep.subr.mxu0 0.0
    %192 = vmatpush1.xpose.msra.mxu0 0.0
    %193 = vmatprep.subr.mxu0 0.0
    %194 = vmatpush1.xpose.msra.mxu0 0.0
    %195 = vmatprep.subr.mxu0 0.0
    %196 = vmatpush1.xpose.msra.mxu0 0.0
    %197 = vmatprep.subr.mxu0 0.0
    %198 = vmatpush1.xpose.msra.mxu0 0.0
    %199 = vmatprep.subr.mxu0 0.0
    %200 = vmatpush1.xpose.msra.mxu0 0.0
    %201 = vmatprep.subr.mxu0 0.0
    %202 = vmatpush1.xpose.msra.mxu0 0.0
    %203 = vmatprep.subr.mxu0 0.0
    %204 = vmatpush1.xpose.msra.mxu0 0.0
    %205 = vmatprep.subr.mxu0 0.0
    %206 = vmatpush1.xpose.msra.mxu0 0.0
    %207 = vmatprep.subr.mxu0 0.0
    %208 = vmatpush1.xpose.msra.mxu0 0.0
    %209 = vmatprep.subr.mxu0 0.0
    %210 = vmatpush1.xpose.msra.mxu0 0.0
    %211 = vmatprep.subr.mxu0 0.0
    %212 = vmatpush1.xpose.msra.mxu0 0.0
    %213 = vmatprep.subr.mxu0 0.0
    %214 = vmatpush1.xpose.msra.mxu0 0.0
    %215 = vmatprep.subr.mxu0 0.0
    %216 = vmatpush1.xpose.msra.mxu0 0.0
    %217 = vmatprep.subr.mxu0 0.0
    %218 = vmatpush1.xpose.msra.mxu0 0.0
    %219 = vmatprep.subr.mxu0 0.0
    %220 = vmatpush1.xpose.msra.mxu0 0.0
    %221 = vmatprep.mubr.f32.mxu0 0.0
    %222 = vmatmul.mubr.f32.gmra.mrb[0].mxu0 %v153
    %v223 = vpop.f32.mrb[0].mxu0
    %v224 = vadd.f32 0.0, %v223
    %v225 = vpop.f32.mrb[0].mxu0
    %226 = vdwg.mxu0
    %vm227 = vcmask 64512
    %v228 = vsel %vm227, %v224, -inf
    %229 = vmax.xlane.f32.xlu0 %v228
    %v230 = vpop.xlane.xlu0 %229
    %v231 = vsub.f32 %v224, %v230
    %v232 = vmul.f32 %v231, 1.442695
    %v233 = vpow.pop %v232
    %v234 = vsel %vm227, %v233, 0.0
    %235 = vadd.xlane.f32.xlu0 %v234
    %v236 = vpop.xlane.xlu0 %235
    %v237 = vrcp.pop %v236
    %v238 = vmul.f32 %v233, %v237
    %v240 = vsel %vm227, %v238, 0
    %242 = vmatprep.subr.mxu0 0.0
    %243 = vmatpush1.msra.mxu0 %v132
    %244 = vmatprep.subr.mxu0 0.0
    %245 = vmatpush1.msra.mxu0 0.0
    %246 = vmatprep.subr.mxu0 0.0
    %247 = vmatpush1.msra.mxu0 0.0
    %248 = vmatprep.subr.mxu0 0.0
    %249 = vmatpush1.msra.mxu0 0.0
    %250 = vmatprep.subr.mxu0 0.0
    %251 = vmatpush1.msra.mxu0 0.0
    %252 = vmatprep.subr.mxu0 0.0
    %253 = vmatpush1.msra.mxu0 0.0
    %254 = vmatprep.subr.mxu0 0.0
    %255 = vmatpush1.msra.mxu0 0.0
    %256 = vmatprep.subr.mxu0 0.0
    %257 = vmatpush1.msra.mxu0 0.0
    %258 = vmatprep.subr.mxu0 0.0
    %259 = vmatpush1.msra.mxu0 0.0
    %260 = vmatprep.subr.mxu0 0.0
    %261 = vmatpush1.msra.mxu0 0.0
    %262 = vmatprep.subr.mxu0 0.0
    %263 = vmatpush1.msra.mxu0 0.0
    %264 = vmatprep.subr.mxu0 0.0
    %265 = vmatpush1.msra.mxu0 0.0
    %266 = vmatprep.subr.mxu0 0.0
    %267 = vmatpush1.msra.mxu0 0.0
    %268 = vmatprep.subr.mxu0 0.0
    %269 = vmatpush1.msra.mxu0 0.0
    %270 = vmatprep.subr.mxu0 0.0
    %271 = vmatpush1.msra.mxu0 0.0
    %272 = vmatprep.subr.mxu0 0.0
    %273 = vmatpush1.msra.mxu0 0.0
    %274 = vmatprep.subr.mxu0 0.0
    %275 = vmatpush1.msra.mxu0 0.0
    %276 = vmatprep.subr.mxu0 0.0
    %277 = vmatpush1.msra.mxu0 0.0
    %278 = vmatprep.subr.mxu0 0.0
    %279 = vmatpush1.msra.mxu0 0.0
    %280 = vmatprep.subr.mxu0 0.0
    %281 = vmatpush1.msra.mxu0 0.0
    %282 = vmatprep.subr.mxu0 0.0
    %283 = vmatpush1.msra.mxu0 0.0
    %284 = vmatprep.subr.mxu0 0.0
    %285 = vmatpush1.msra.mxu0 0.0
    %286 = vmatprep.subr.mxu0 0.0
    %287 = vmatpush1.msra.mxu0 0.0
    %288 = vmatprep.subr.mxu0 0.0
    %289 = vmatpush1.msra.mxu0 0.0
    %290 = vmatprep.subr.mxu0 0.0
    %291 = vmatpush1.msra.mxu0 0.0
    %292 = vmatprep.subr.mxu0 0.0
    %293 = vmatpush1.msra.mxu0 0.0
    %294 = vmatprep.subr.mxu0 0.0
    %295 = vmatpush1.msra.mxu0 0.0
    %296 = vmatprep.subr.mxu0 0.0
    %297 = vmatpush1.msra.mxu0 0.0
    %298 = vmatprep.subr.mxu0 0.0
    %299 = vmatpush1.msra.mxu0 0.0
    %300 = vmatprep.subr.mxu0 0.0
    %301 = vmatpush1.msra.mxu0 0.0
    %302 = vmatprep.subr.mxu0 0.0
    %303 = vmatpush1.msra.mxu0 0.0
    %304 = vmatprep.subr.mxu0 0.0
    %305 = vmatpush1.msra.mxu0 0.0
    %306 = vmatprep.mubr.f32.mxu0 0.0
    %307 = vmatmul.mubr.f32.gmra.mrb[0].mxu0 %v240
    %v308 = vpop.f32.mrb[0].mxu0
    %v309 = vadd.f32 0.0, %v308
    %v310 = vpop.f32.mrb[0].mxu0
    %311 = vdwg.mxu0
    %312 = vrot.lane.b32.xlu0 %v130, 112
    %v313 = vpop.permute.xlu0 %312
    %314 = vrot.lane.b32.xlu0 %v130, 48
    %v315 = vpop.permute.xlu0 %314
    %v316 = vsel %vm152, %v313, 0
    %v318 = vsel %vm152, %v315, 0
    %320 = vmatprep.subr.mxu0 0.0
    %321 = vmatpush1.xpose.msra.mxu0 %v318
    %322 = vmatprep.subr.mxu0 0.0
    %323 = vmatpush1.xpose.msra.mxu0 0.0
    %324 = vmatprep.subr.mxu0 0.0
    %325 = vmatpush1.xpose.msra.mxu0 0.0
    %326 = vmatprep.subr.mxu0 0.0
    %327 = vmatpush1.xpose.msra.mxu0 0.0
    %328 = vmatprep.subr.mxu0 0.0
    %329 = vmatpush1.xpose.msra.mxu0 0.0
    %330 = vmatprep.subr.mxu0 0.0
    %331 = vmatpush1.xpose.msra.mxu0 0.0
    %332 = vmatprep.subr.mxu0 0.0
    %333 = vmatpush1.xpose.msra.mxu0 0.0
    %334 = vmatprep.subr.mxu0 0.0
    %335 = vmatpush1.xpose.msra.mxu0 0.0
    %336 = vmatprep.subr.mxu0 0.0
    %337 = vmatpush1.xpose.msra.mxu0 0.0
    %338 = vmatprep.subr.mxu0 0.0
    %339 = vmatpush1.xpose.msra.mxu0 0.0
    %340 = vmatprep.subr.mxu0 0.0
    %341 = vmatpush1.xpose.msra.mxu0 0.0
    %342 = vmatprep.subr.mxu0 0.0
    %343 = vmatpush1.xpose.msra.mxu0 0.0
    %344 = vmatprep.subr.mxu0 0.0
    %345 = vmatpush1.xpose.msra.mxu0 0.0
    %346 = vmatprep.subr.mxu0 0.0
    %347 = vmatpush1.xpose.msra.mxu0 0.0
    %348 = vmatprep.subr.mxu0 0.0
    %349 = vmatpush1.xpose.msra.mxu0 0.0
    %350 = vmatprep.subr.mxu0 0.0
    %351 = vmatpush1.xpose.msra.mxu0 0.0
    %352 = vmatprep.subr.mxu0 0.0
    %353 = vmatpush1.xpose.msra.mxu0 0.0
    %354 = vmatprep.subr.mxu0 0.0
    %355 = vmatpush1.xpose.msra.mxu0 0.0
    %356 = vmatprep.subr.mxu0 0.0
    %357 = vmatpush1.xpose.msra.mxu0 0.0
    %358 = vmatprep.subr.mxu0 0.0
    %359 = vmatpush1.xpose.msra.mxu0 0.0
    %360 = vmatprep.subr.mxu0 0.0
    %361 = vmatpush1.xpose.msra.mxu0 0.0
    %362 = vmatprep.subr.mxu0 0.0
    %363 = vmatpush1.xpose.msra.mxu0 0.0
    %364 = vmatprep.subr.mxu0 0.0
    %365 = vmatpush1.xpose.msra.mxu0 0.0
    %366 = vmatprep.subr.mxu0 0.0
    %367 = vmatpush1.xpose.msra.mxu0 0.0
    %368 = vmatprep.subr.mxu0 0.0
    %369 = vmatpush1.xpose.msra.mxu0 0.0
    %370 = vmatprep.subr.mxu0 0.0
    %371 = vmatpush1.xpose.msra.mxu0 0.0
    %372 = vmatprep.subr.mxu0 0.0
    %373 = vmatpush1.xpose.msra.mxu0 0.0
    %374 = vmatprep.subr.mxu0 0.0
    %375 = vmatpush1.xpose.msra.mxu0 0.0
    %376 = vmatprep.subr.mxu0 0.0
    %377 = vmatpush1.xpose.msra.mxu0 0.0
    %378 = vmatprep.subr.mxu0 0.0
    %379 = vmatpush1.xpose.msra.mxu0 0.0
    %380 = vmatprep.subr.mxu0 0.0
    %381 = vmatpush1.xpose.msra.mxu0 0.0
    %382 = vmatprep.subr.mxu0 0.0
    %383 = vmatpush1.xpose.msra.mxu0 0.0
    %384 = vmatprep.mubr.f32.mxu0 0.0
    %385 = vmatmul.mubr.f32.gmra.mrb[0].mxu0 %v316
    %v386 = vpop.f32.mrb[0].mxu0
    %v387 = vadd.f32 0.0, %v386
    %v388 = vpop.f32.mrb[0].mxu0
    %389 = vdwg.mxu0
    %v390 = vsel %vm227, %v387, -inf
    %391 = vmax.xlane.f32.xlu0 %v390
    %v392 = vpop.xlane.xlu0 %391
    %v393 = vsub.f32 %v387, %v392
    %v394 = vmul.f32 %v393, 1.442695
    %v395 = vpow.pop %v394
    %v396 = vsel %vm227, %v395, 0.0
    %397 = vadd.xlane.f32.xlu0 %v396
    %v398 = vpop.xlane.xlu0 %397
    %v399 = vrcp.pop %v398
    %v400 = vmul.f32 %v395, %v399
    %402 = vrot.lane.b32.xlu0 %v132, 112
    %v403 = vpop.permute.xlu0 %402
    %v406 = vsel %vm227, %v400, 0
    %408 = vmatprep.subr.mxu0 0.0
    %409 = vmatpush1.msra.mxu0 %v403
    %410 = vmatprep.subr.mxu0 0.0
    %411 = vmatpush1.msra.mxu0 0.0
    %412 = vmatprep.subr.mxu0 0.0
    %413 = vmatpush1.msra.mxu0 0.0
    %414 = vmatprep.subr.mxu0 0.0
    %415 = vmatpush1.msra.mxu0 0.0
    %416 = vmatprep.subr.mxu0 0.0
    %417 = vmatpush1.msra.mxu0 0.0
    %418 = vmatprep.subr.mxu0 0.0
    %419 = vmatpush1.msra.mxu0 0.0
    %420 = vmatprep.subr.mxu0 0.0
    %421 = vmatpush1.msra.mxu0 0.0
    %422 = vmatprep.subr.mxu0 0.0
    %423 = vmatpush1.msra.mxu0 0.0
    %424 = vmatprep.subr.mxu0 0.0
    %425 = vmatpush1.msra.mxu0 0.0
    %426 = vmatprep.subr.mxu0 0.0
    %427 = vmatpush1.msra.mxu0 0.0
    %428 = vmatprep.subr.mxu0 0.0
    %429 = vmatpush1.msra.mxu0 0.0
    %430 = vmatprep.subr.mxu0 0.0
    %431 = vmatpush1.msra.mxu0 0.0
    %432 = vmatprep.subr.mxu0 0.0
    %433 = vmatpush1.msra.mxu0 0.0
    %434 = vmatprep.subr.mxu0 0.0
    %435 = vmatpush1.msra.mxu0 0.0
    %436 = vmatprep.subr.mxu0 0.0
    %437 = vmatpush1.msra.mxu0 0.0
    %438 = vmatprep.subr.mxu0 0.0
    %439 = vmatpush1.msra.mxu0 0.0
    %440 = vmatprep.subr.mxu0 0.0
    %441 = vmatpush1.msra.mxu0 0.0
    %442 = vmatprep.subr.mxu0 0.0
    %443 = vmatpush1.msra.mxu0 0.0
    %444 = vmatprep.subr.mxu0 0.0
    %445 = vmatpush1.msra.mxu0 0.0
    %446 = vmatprep.subr.mxu0 0.0
    %447 = vmatpush1.msra.mxu0 0.0
    %448 = vmatprep.subr.mxu0 0.0
    %449 = vmatpush1.msra.mxu0 0.0
    %450 = vmatprep.subr.mxu0 0.0
    %451 = vmatpush1.msra.mxu0 0.0
    %452 = vmatprep.subr.mxu0 0.0
    %453 = vmatpush1.msra.mxu0 0.0
    %454 = vmatprep.subr.mxu0 0.0
    %455 = vmatpush1.msra.mxu0 0.0
    %456 = vmatprep.subr.mxu0 0.0
    %457 = vmatpush1.msra.mxu0 0.0
    %458 = vmatprep.subr.mxu0 0.0
    %459 = vmatpush1.msra.mxu0 0.0
    %460 = vmatprep.subr.mxu0 0.0
    %461 = vmatpush1.msra.mxu0 0.0
    %462 = vmatprep.subr.mxu0 0.0
    %463 = vmatpush1.msra.mxu0 0.0
    %464 = vmatprep.subr.mxu0 0.0
    %465 = vmatpush1.msra.mxu0 0.0
    %466 = vmatprep.subr.mxu0 0.0
    %467 = vmatpush1.msra.mxu0 0.0
    %468 = vmatprep.subr.mxu0 0.0
    %469 = vmatpush1.msra.mxu0 0.0
    %470 = vmatprep.subr.mxu0 0.0
    %471 = vmatpush1.msra.mxu0 0.0
    %472 = vmatprep.mubr.f32.mxu0 0.0
    %473 = vmatmul.mubr.f32.gmra.mrb[0].mxu0 %v406
    %v474 = vpop.f32.mrb[0].mxu0
    %v475 = vadd.f32 0.0, %v474
    %v476 = vpop.f32.mrb[0].mxu0
    %477 = vdwg.mxu0
    %478 = vrot.lane.b32.xlu0 %v130, 96
    %v479 = vpop.permute.xlu0 %478
    %480 = vrot.lane.b32.xlu0 %v130, 32
    %v481 = vpop.permute.xlu0 %480
    %v482 = vsel %vm152, %v479, 0
    %v484 = vsel %vm152, %v481, 0
    %486 = vmatprep.subr.mxu0 0.0
    %487 = vmatpush1.xpose.msra.mxu0 %v484
    %488 = vmatprep.subr.mxu0 0.0
    %489 = vmatpush1.xpose.msra.mxu0 0.0
    %490 = vmatprep.subr.mxu0 0.0
    %491 = vmatpush1.xpose.msra.mxu0 0.0
    %492 = vmatprep.subr.mxu0 0.0
    %493 = vmatpush1.xpose.msra.mxu0 0.0
    %494 = vmatprep.subr.mxu0 0.0
    %495 = vmatpush1.xpose.msra.mxu0 0.0
    %496 = vmatprep.subr.mxu0 0.0
    %497 = vmatpush1.xpose.msra.mxu0 0.0
    %498 = vmatprep.subr.mxu0 0.0
    %499 = vmatpush1.xpose.msra.mxu0 0.0
    %500 = vmatprep.subr.mxu0 0.0
    %501 = vmatpush1.xpose.msra.mxu0 0.0
    %502 = vmatprep.subr.mxu0 0.0
    %503 = vmatpush1.xpose.msra.mxu0 0.0
    %504 = vmatprep.subr.mxu0 0.0
    %505 = vmatpush1.xpose.msra.mxu0 0.0
    %506 = vmatprep.subr.mxu0 0.0
    %507 = vmatpush1.xpose.msra.mxu0 0.0
    %508 = vmatprep.subr.mxu0 0.0
    %509 = vmatpush1.xpose.msra.mxu0 0.0
    %510 = vmatprep.subr.mxu0 0.0
    %511 = vmatpush1.xpose.msra.mxu0 0.0
    %512 = vmatprep.subr.mxu0 0.0
    %513 = vmatpush1.xpose.msra.mxu0 0.0
    %514 = vmatprep.subr.mxu0 0.0
    %515 = vmatpush1.xpose.msra.mxu0 0.0
    %516 = vmatprep.subr.mxu0 0.0
    %517 = vmatpush1.xpose.msra.mxu0 0.0
    %518 = vmatprep.subr.mxu0 0.0
    %519 = vmatpush1.xpose.msra.mxu0 0.0
    %520 = vmatprep.subr.mxu0 0.0
    %521 = vmatpush1.xpose.msra.mxu0 0.0
    %522 = vmatprep.subr.mxu0 0.0
    %523 = vmatpush1.xpose.msra.mxu0 0.0
    %524 = vmatprep.subr.mxu0 0.0
    %525 = vmatpush1.xpose.msra.mxu0 0.0
    %526 = vmatprep.subr.mxu0 0.0
    %527 = vmatpush1.xpose.msra.mxu0 0.0
    %528 = vmatprep.subr.mxu0 0.0
    %529 = vmatpush1.xpose.msra.mxu0 0.0
    %530 = vmatprep.subr.mxu0 0.0
    %531 = vmatpush1.xpose.msra.mxu0 0.0
    %532 = vmatprep.subr.mxu0 0.0
    %533 = vmatpush1.xpose.msra.mxu0 0.0
    %534 = vmatprep.subr.mxu0 0.0
    %535 = vmatpush1.xpose.msra.mxu0 0.0
    %536 = vmatprep.subr.mxu0 0.0
    %537 = vmatpush1.xpose.msra.mxu0 0.0
    %538 = vmatprep.subr.mxu0 0.0
    %539 = vmatpush1.xpose.msra.mxu0 0.0
    %540 = vmatprep.subr.mxu0 0.0
    %541 = vmatpush1.xpose.msra.mxu0 0.0
    %542 = vmatprep.subr.mxu0 0.0
    %543 = vmatpush1.xpose.msra.mxu0 0.0
    %544 = vmatprep.subr.mxu0 0.0
    %545 = vmatpush1.xpose.msra.mxu0 0.0
    %546 = vmatprep.subr.mxu0 0.0
    %547 = vmatpush1.xpose.msra.mxu0 0.0
    %548 = vmatprep.subr.mxu0 0.0
    %549 = vmatpush1.xpose.msra.mxu0 0.0
    %550 = vmatprep.mubr.f32.mxu0 0.0
    %551 = vmatmul.mubr.f32.gmra.mrb[0].mxu0 %v482
    %v552 = vpop.f32.mrb[0].mxu0
    %v553 = vadd.f32 0.0, %v552
    %v554 = vpop.f32.mrb[0].mxu0
    %555 = vdwg.mxu0
    %v556 = vsel %vm227, %v553, -inf
    %557 = vmax.xlane.f32.xlu0 %v556
    %v558 = vpop.xlane.xlu0 %557
    %v559 = vsub.f32 %v553, %v558
    %v560 = vmul.f32 %v559, 1.442695
    %v561 = vpow.pop %v560
    %v562 = vsel %vm227, %v561, 0.0
    %563 = vadd.xlane.f32.xlu0 %v562
    %v564 = vpop.xlane.xlu0 %563
    %v565 = vrcp.pop %v564
    %v566 = vmul.f32 %v561, %v565
    %567 = vrot.lane.b32.xlu0 %v132, 96
    %v568 = vpop.permute.xlu0 %567
    %v571 = vsel %vm227, %v566, 0
    %573 = vmatprep.subr.mxu0 0.0
    %574 = vmatpush1.msra.mxu0 %v568
    %575 = vmatprep.subr.mxu0 0.0
    %576 = vmatpush1.msra.mxu0 0.0
    %577 = vmatprep.subr.mxu0 0.0
    %578 = vmatpush1.msra.mxu0 0.0
    %579 = vmatprep.subr.mxu0 0.0
    %580 = vmatpush1.msra.mxu0 0.0
    %581 = vmatprep.subr.mxu0 0.0
    %582 = vmatpush1.msra.mxu0 0.0
    %583 = vmatprep.subr.mxu0 0.0
    %584 = vmatpush1.msra.mxu0 0.0
    %585 = vmatprep.subr.mxu0 0.0
    %586 = vmatpush1.msra.mxu0 0.0
    %587 = vmatprep.subr.mxu0 0.0
    %588 = vmatpush1.msra.mxu0 0.0
    %589 = vmatprep.subr.mxu0 0.0
    %590 = vmatpush1.msra.mxu0 0.0
    %591 = vmatprep.subr.mxu0 0.0
    %592 = vmatpush1.msra.mxu0 0.0
    %593 = vmatprep.subr.mxu0 0.0
    %594 = vmatpush1.msra.mxu0 0.0
    %595 = vmatprep.subr.mxu0 0.0
    %596 = vmatpush1.msra.mxu0 0.0
    %597 = vmatprep.subr.mxu0 0.0
    %598 = vmatpush1.msra.mxu0 0.0
    %599 = vmatprep.subr.mxu0 0.0
    %600 = vmatpush1.msra.mxu0 0.0
    %601 = vmatprep.subr.mxu0 0.0
    %602 = vmatpush1.msra.mxu0 0.0
    %603 = vmatprep.subr.mxu0 0.0
    %604 = vmatpush1.msra.mxu0 0.0
    %605 = vmatprep.subr.mxu0 0.0
    %606 = vmatpush1.msra.mxu0 0.0
    %607 = vmatprep.subr.mxu0 0.0
    %608 = vmatpush1.msra.mxu0 0.0
    %609 = vmatprep.subr.mxu0 0.0
    %610 = vmatpush1.msra.mxu0 0.0
    %611 = vmatprep.subr.mxu0 0.0
    %612 = vmatpush1.msra.mxu0 0.0
    %613 = vmatprep.subr.mxu0 0.0
    %614 = vmatpush1.msra.mxu0 0.0
    %615 = vmatprep.subr.mxu0 0.0
    %616 = vmatpush1.msra.mxu0 0.0
    %617 = vmatprep.subr.mxu0 0.0
    %618 = vmatpush1.msra.mxu0 0.0
    %619 = vmatprep.subr.mxu0 0.0
    %620 = vmatpush1.msra.mxu0 0.0
    %621 = vmatprep.subr.mxu0 0.0
    %622 = vmatpush1.msra.mxu0 0.0
    %623 = vmatprep.subr.mxu0 0.0
    %624 = vmatpush1.msra.mxu0 0.0
    %625 = vmatprep.subr.mxu0 0.0
    %626 = vmatpush1.msra.mxu0 0.0
    %627 = vmatprep.subr.mxu0 0.0
    %628 = vmatpush1.msra.mxu0 0.0
    %629 = vmatprep.subr.mxu0 0.0
    %630 = vmatpush1.msra.mxu0 0.0
    %631 = vmatprep.subr.mxu0 0.0
    %632 = vmatpush1.msra.mxu0 0.0
    %633 = vmatprep.subr.mxu0 0.0
    %634 = vmatpush1.msra.mxu0 0.0
    %635 = vmatprep.subr.mxu0 0.0
    %636 = vmatpush1.msra.mxu0 0.0
    %637 = vmatprep.mubr.f32.mxu0 0.0
    %638 = vmatmul.mubr.f32.gmra.mrb[0].mxu0 %v571
    %v639 = vpop.f32.mrb[0].mxu0
    %v640 = vadd.f32 0.0, %v639
    %v641 = vpop.f32.mrb[0].mxu0
    %642 = vdwg.mxu0
    %643 = vrot.lane.b32.xlu0 %v130, 80
    %v644 = vpop.permute.xlu0 %643
    %645 = vrot.lane.b32.xlu0 %v130, 16
    %v646 = vpop.permute.xlu0 %645
    %v647 = vsel %vm152, %v644, 0
    %v649 = vsel %vm152, %v646, 0
    %651 = vmatprep.subr.mxu0 0.0
    %652 = vmatpush1.xpose.msra.mxu0 %v649
    %653 = vmatprep.subr.mxu0 0.0
    %654 = vmatpush1.xpose.msra.mxu0 0.0
    %655 = vmatprep.subr.mxu0 0.0
    %656 = vmatpush1.xpose.msra.mxu0 0.0
    %657 = vmatprep.subr.mxu0 0.0
    %658 = vmatpush1.xpose.msra.mxu0 0.0
    %659 = vmatprep.subr.mxu0 0.0
    %660 = vmatpush1.xpose.msra.mxu0 0.0
    %661 = vmatprep.subr.mxu0 0.0
    %662 = vmatpush1.xpose.msra.mxu0 0.0
    %663 = vmatprep.subr.mxu0 0.0
    %664 = vmatpush1.xpose.msra.mxu0 0.0
    %665 = vmatprep.subr.mxu0 0.0
    %666 = vmatpush1.xpose.msra.mxu0 0.0
    %667 = vmatprep.subr.mxu0 0.0
    %668 = vmatpush1.xpose.msra.mxu0 0.0
    %669 = vmatprep.subr.mxu0 0.0
    %670 = vmatpush1.xpose.msra.mxu0 0.0
    %671 = vmatprep.subr.mxu0 0.0
    %672 = vmatpush1.xpose.msra.mxu0 0.0
    %673 = vmatprep.subr.mxu0 0.0
    %674 = vmatpush1.xpose.msra.mxu0 0.0
    %675 = vmatprep.subr.mxu0 0.0
    %676 = vmatpush1.xpose.msra.mxu0 0.0
    %677 = vmatprep.subr.mxu0 0.0
    %678 = vmatpush1.xpose.msra.mxu0 0.0
    %679 = vmatprep.subr.mxu0 0.0
    %680 = vmatpush1.xpose.msra.mxu0 0.0
    %681 = vmatprep.subr.mxu0 0.0
    %682 = vmatpush1.xpose.msra.mxu0 0.0
    %683 = vmatprep.subr.mxu0 0.0
    %684 = vmatpush1.xpose.msra.mxu0 0.0
    %685 = vmatprep.subr.mxu0 0.0
    %686 = vmatpush1.xpose.msra.mxu0 0.0
    %687 = vmatprep.subr.mxu0 0.0
    %688 = vmatpush1.xpose.msra.mxu0 0.0
    %689 = vmatprep.subr.mxu0 0.0
    %690 = vmatpush1.xpose.msra.mxu0 0.0
    %691 = vmatprep.subr.mxu0 0.0
    %692 = vmatpush1.xpose.msra.mxu0 0.0
    %693 = vmatprep.subr.mxu0 0.0
    %694 = vmatpush1.xpose.msra.mxu0 0.0
    %695 = vmatprep.subr.mxu0 0.0
    %696 = vmatpush1.xpose.msra.mxu0 0.0
    %697 = vmatprep.subr.mxu0 0.0
    %698 = vmatpush1.xpose.msra.mxu0 0.0
    %699 = vmatprep.subr.mxu0 0.0
    %700 = vmatpush1.xpose.msra.mxu0 0.0
    %701 = vmatprep.subr.mxu0 0.0
    %702 = vmatpush1.xpose.msra.mxu0 0.0
    %703 = vmatprep.subr.mxu0 0.0
    %704 = vmatpush1.xpose.msra.mxu0 0.0
    %705 = vmatprep.subr.mxu0 0.0
    %706 = vmatpush1.xpose.msra.mxu0 0.0
    %707 = vmatprep.subr.mxu0 0.0
    %708 = vmatpush1.xpose.msra.mxu0 0.0
    %709 = vmatprep.subr.mxu0 0.0
    %710 = vmatpush1.xpose.msra.mxu0 0.0
    %711 = vmatprep.subr.mxu0 0.0
    %712 = vmatpush1.xpose.msra.mxu0 0.0
    %713 = vmatprep.subr.mxu0 0.0
    %714 = vmatpush1.xpose.msra.mxu0 0.0
    %715 = vmatprep.mubr.f32.mxu0 0.0
    %716 = vmatmul.mubr.f32.gmra.mrb[0].mxu0 %v647
    %v717 = vpop.f32.mrb[0].mxu0
    %v718 = vadd.f32 0.0, %v717
    %v719 = vpop.f32.mrb[0].mxu0
    %720 = vdwg.mxu0
    %v721 = vsel %vm227, %v718, -inf
    %722 = vmax.xlane.f32.xlu0 %v721
    %v723 = vpop.xlane.xlu0 %722
    %v724 = vsub.f32 %v718, %v723
    %v725 = vmul.f32 %v724, 1.442695
    %v726 = vpow.pop %v725
    %v727 = vsel %vm227, %v726, 0.0
    %728 = vadd.xlane.f32.xlu0 %v727
    %v729 = vpop.xlane.xlu0 %728
    %v730 = vrcp.pop %v729
    %v731 = vmul.f32 %v726, %v730
    %732 = vrot.lane.b32.xlu0 %v132, 80
    %v733 = vpop.permute.xlu0 %732
    %v736 = vsel %vm227, %v731, 0
    %738 = vmatprep.subr.mxu0 0.0
    %739 = vmatpush1.msra.mxu0 %v733
    %740 = vmatprep.subr.mxu0 0.0
    %741 = vmatpush1.msra.mxu0 0.0
    %742 = vmatprep.subr.mxu0 0.0
    %743 = vmatpush1.msra.mxu0 0.0
    %744 = vmatprep.subr.mxu0 0.0
    %745 = vmatpush1.msra.mxu0 0.0
    %746 = vmatprep.subr.mxu0 0.0
    %747 = vmatpush1.msra.mxu0 0.0
    %748 = vmatprep.subr.mxu0 0.0
    %749 = vmatpush1.msra.mxu0 0.0
    %750 = vmatprep.subr.mxu0 0.0
    %751 = vmatpush1.msra.mxu0 0.0
    %752 = vmatprep.subr.mxu0 0.0
    %753 = vmatpush1.msra.mxu0 0.0
    %754 = vmatprep.subr.mxu0 0.0
    %755 = vmatpush1.msra.mxu0 0.0
    %756 = vmatprep.subr.mxu0 0.0
    %757 = vmatpush1.msra.mxu0 0.0
    %758 = vmatprep.subr.mxu0 0.0
    %759 = vmatpush1.msra.mxu0 0.0
    %760 = vmatprep.subr.mxu0 0.0
    %761 = vmatpush1.msra.mxu0 0.0
    %762 = vmatprep.subr.mxu0 0.0
    %763 = vmatpush1.msra.mxu0 0.0
    %764 = vmatprep.subr.mxu0 0.0
    %765 = vmatpush1.msra.mxu0 0.0
    %766 = vmatprep.subr.mxu0 0.0
    %767 = vmatpush1.msra.mxu0 0.0
    %768 = vmatprep.subr.mxu0 0.0
    %769 = vmatpush1.msra.mxu0 0.0
    %770 = vmatprep.subr.mxu0 0.0
    %771 = vmatpush1.msra.mxu0 0.0
    %772 = vmatprep.subr.mxu0 0.0
    %773 = vmatpush1.msra.mxu0 0.0
    %774 = vmatprep.subr.mxu0 0.0
    %775 = vmatpush1.msra.mxu0 0.0
    %776 = vmatprep.subr.mxu0 0.0
    %777 = vmatpush1.msra.mxu0 0.0
    %778 = vmatprep.subr.mxu0 0.0
    %779 = vmatpush1.msra.mxu0 0.0
    %780 = vmatprep.subr.mxu0 0.0
    %781 = vmatpush1.msra.mxu0 0.0
    %782 = vmatprep.subr.mxu0 0.0
    %783 = vmatpush1.msra.mxu0 0.0
    %784 = vmatprep.subr.mxu0 0.0
    %785 = vmatpush1.msra.mxu0 0.0
    %786 = vmatprep.subr.mxu0 0.0
    %787 = vmatpush1.msra.mxu0 0.0
    %788 = vmatprep.subr.mxu0 0.0
    %789 = vmatpush1.msra.mxu0 0.0
    %790 = vmatprep.subr.mxu0 0.0
    %791 = vmatpush1.msra.mxu0 0.0
    %792 = vmatprep.subr.mxu0 0.0
    %793 = vmatpush1.msra.mxu0 0.0
    %794 = vmatprep.subr.mxu0 0.0
    %795 = vmatpush1.msra.mxu0 0.0
    %796 = vmatprep.subr.mxu0 0.0
    %797 = vmatpush1.msra.mxu0 0.0
    %798 = vmatprep.subr.mxu0 0.0
    %799 = vmatpush1.msra.mxu0 0.0
    %800 = vmatprep.subr.mxu0 0.0
    %801 = vmatpush1.msra.mxu0 0.0
    %802 = vmatprep.mubr.f32.mxu0 0.0
    %803 = vmatmul.mubr.f32.gmra.mrb[0].mxu0 %v736
    %v804 = vpop.f32.mrb[0].mxu0
    %v805 = vadd.f32 0.0, %v804
    %v806 = vpop.f32.mrb[0].mxu0
    %807 = vdwg.mxu0
    %809 = vrot.lane.b32.xlu0 %v475, 16
    %v810 = vpop.permute.xlu0 %809
    %813 = vrot.lane.b32.xlu0 %v640, 32
    %v814 = vpop.permute.xlu0 %813
    %817 = vrot.lane.b32.xlu0 %v805, 48
    %v818 = vpop.permute.xlu0 %817
    %v820 = vsel %vm152, %v309, %v810
    %vm821 = vcmask 261120
    %v822 = vsel %vm821, %v820, %v814
    %vm823 = vcmask 392192
    %v824 = vsel %vm823, %v822, %v818
    %825 = vrot.lane.b32.xlu0 %v400, 8
    %v826 = vpop.permute.xlu0 %825
    %828 = vrot.lane.b32.xlu0 %v566, 16
    %v829 = vpop.permute.xlu0 %828
    %831 = vrot.lane.b32.xlu0 %v731, 24
    %v832 = vpop.permute.xlu0 %831
    %v834 = vsel %vm227, %v238, %v826
    %v835 = vsel %vm152, %v834, %v829
    %vm836 = vcmask 195584
    %v837 = vsel %vm836, %v835, %v832
    %839 = vrot.lane.b32.xlu0 %v136, 64
    %v840 = vpop.permute.xlu0 %839
    %v841 = vsel %vm152, %v136, 0
    %v843 = vsel %vm152, %v840, 0
    %845 = vmatprep.subr.mxu0 0.0
    %846 = vmatpush1.xpose.msra.mxu0 %v843
    %847 = vmatprep.subr.mxu0 0.0
    %848 = vmatpush1.xpose.msra.mxu0 0.0
    %849 = vmatprep.subr.mxu0 0.0
    %850 = vmatpush1.xpose.msra.mxu0 0.0
    %851 = vmatprep.subr.mxu0 0.0
    %852 = vmatpush1.xpose.msra.mxu0 0.0
    %853 = vmatprep.subr.mxu0 0.0
    %854 = vmatpush1.xpose.msra.mxu0 0.0
    %855 = vmatprep.subr.mxu0 0.0
    %856 = vmatpush1.xpose.msra.mxu0 0.0
    %857 = vmatprep.subr.mxu0 0.0
    %858 = vmatpush1.xpose.msra.mxu0 0.0
    %859 = vmatprep.subr.mxu0 0.0
    %860 = vmatpush1.xpose.msra.mxu0 0.0
    %861 = vmatprep.subr.mxu0 0.0
    %862 = vmatpush1.xpose.msra.mxu0 0.0
    %863 = vmatprep.subr.mxu0 0.0
    %864 = vmatpush1.xpose.msra.mxu0 0.0
    %865 = vmatprep.subr.mxu0 0.0
    %866 = vmatpush1.xpose.msra.mxu0 0.0
    %867 = vmatprep.subr.mxu0 0.0
    %868 = vmatpush1.xpose.msra.mxu0 0.0
    %869 = vmatprep.subr.mxu0 0.0
    %870 = vmatpush1.xpose.msra.mxu0 0.0
    %871 = vmatprep.subr.mxu0 0.0
    %872 = vmatpush1.xpose.msra.mxu0 0.0
    %873 = vmatprep.subr.mxu0 0.0
    %874 = vmatpush1.xpose.msra.mxu0 0.0
    %875 = vmatprep.subr.mxu0 0.0
    %876 = vmatpush1.xpose.msra.mxu0 0.0
    %877 = vmatprep.subr.mxu0 0.0
    %878 = vmatpush1.xpose.msra.mxu0 0.0
    %879 = vmatprep.subr.mxu0 0.0
    %880 = vmatpush1.xpose.msra.mxu0 0.0
    %881 = vmatprep.subr.mxu0 0.0
    %882 = vmatpush1.xpose.msra.mxu0 0.0
    %883 = vmatprep.subr.mxu0 0.0
    %884 = vmatpush1.xpose.msra.mxu0 0.0
    %885 = vmatprep.subr.mxu0 0.0
    %886 = vmatpush1.xpose.msra.mxu0 0.0
    %887 = vmatprep.subr.mxu0 0.0
    %888 = vmatpush1.xpose.msra.mxu0 0.0
    %889 = vmatprep.subr.mxu0 0.0
    %890 = vmatpush1.xpose.msra.mxu0 0.0
    %891 = vmatprep.subr.mxu0 0.0
    %892 = vmatpush1.xpose.msra.mxu0 0.0
    %893 = vmatprep.subr.mxu0 0.0
    %894 = vmatpush1.xpose.msra.mxu0 0.0
    %895 = vmatprep.subr.mxu0 0.0
    %896 = vmatpush1.xpose.msra.mxu0 0.0
    %897 = vmatprep.subr.mxu0 0.0
    %898 = vmatpush1.xpose.msra.mxu0 0.0
    %899 = vmatprep.subr.mxu0 0.0
    %900 = vmatpush1.xpose.msra.mxu0 0.0
    %901 = vmatprep.subr.mxu0 0.0
    %902 = vmatpush1.xpose.msra.mxu0 0.0
    %903 = vmatprep.subr.mxu0 0.0
    %904 = vmatpush1.xpose.msra.mxu0 0.0
    %905 = vmatprep.subr.mxu0 0.0
    %906 = vmatpush1.xpose.msra.mxu0 0.0
    %907 = vmatprep.subr.mxu0 0.0
    %908 = vmatpush1.xpose.msra.mxu0 0.0
    %909 = vmatprep.mubr.f32.mxu0 0.0
    %910 = vmatmul.mubr.f32.gmra.mrb[0].mxu0 %v841
    %v911 = vpop.f32.mrb[0].mxu0
    %v912 = vadd.f32 0.0, %v911
    %v913 = vpop.f32.mrb[0].mxu0
    %914 = vdwg.mxu0
    %v915 = vsel %vm227, %v912, -inf
    %916 = vmax.xlane.f32.xlu0 %v915
    %v917 = vpop.xlane.xlu0 %916
    %v918 = vsub.f32 %v912, %v917
    %v919 = vmul.f32 %v918, 1.442695
    %v920 = vpow.pop %v919
    %v921 = vsel %vm227, %v920, 0.0
    %922 = vadd.xlane.f32.xlu0 %v921
    %v923 = vpop.xlane.xlu0 %922
    %v924 = vrcp.pop %v923
    %v925 = vmul.f32 %v920, %v924
    %v927 = vsel %vm227, %v925, 0
    %929 = vmatprep.subr.mxu0 0.0
    %930 = vmatpush1.msra.mxu0 %v138
    %931 = vmatprep.subr.mxu0 0.0
    %932 = vmatpush1.msra.mxu0 0.0
    %933 = vmatprep.subr.mxu0 0.0
    %934 = vmatpush1.msra.mxu0 0.0
    %935 = vmatprep.subr.mxu0 0.0
    %936 = vmatpush1.msra.mxu0 0.0
    %937 = vmatprep.subr.mxu0 0.0
    %938 = vmatpush1.msra.mxu0 0.0
    %939 = vmatprep.subr.mxu0 0.0
    %940 = vmatpush1.msra.mxu0 0.0
    %941 = vmatprep.subr.mxu0 0.0
    %942 = vmatpush1.msra.mxu0 0.0
    %943 = vmatprep.subr.mxu0 0.0
    %944 = vmatpush1.msra.mxu0 0.0
    %945 = vmatprep.subr.mxu0 0.0
    %946 = vmatpush1.msra.mxu0 0.0
    %947 = vmatprep.subr.mxu0 0.0
    %948 = vmatpush1.msra.mxu0 0.0
    %949 = vmatprep.subr.mxu0 0.0
    %950 = vmatpush1.msra.mxu0 0.0
    %951 = vmatprep.subr.mxu0 0.0
    %952 = vmatpush1.msra.mxu0 0.0
    %953 = vmatprep.subr.mxu0 0.0
    %954 = vmatpush1.msra.mxu0 0.0
    %955 = vmatprep.subr.mxu0 0.0
    %956 = vmatpush1.msra.mxu0 0.0
    %957 = vmatprep.subr.mxu0 0.0
    %958 = vmatpush1.msra.mxu0 0.0
    %959 = vmatprep.subr.mxu0 0.0
    %960 = vmatpush1.msra.mxu0 0.0
    %961 = vmatprep.subr.mxu0 0.0
    %962 = vmatpush1.msra.mxu0 0.0
    %963 = vmatprep.subr.mxu0 0.0
    %964 = vmatpush1.msra.mxu0 0.0
    %965 = vmatprep.subr.mxu0 0.0
    %966 = vmatpush1.msra.mxu0 0.0
    %967 = vmatprep.subr.mxu0 0.0
    %968 = vmatpush1.msra.mxu0 0.0
    %969 = vmatprep.subr.mxu0 0.0
    %970 = vmatpush1.msra.mxu0 0.0
    %971 = vmatprep.subr.mxu0 0.0
    %972 = vmatpush1.msra.mxu0 0.0
    %973 = vmatprep.subr.mxu0 0.0
    %974 = vmatpush1.msra.mxu0 0.0
    %975 = vmatprep.subr.mxu0 0.0
    %976 = vmatpush1.msra.mxu0 0.0
    %977 = vmatprep.subr.mxu0 0.0
    %978 = vmatpush1.msra.mxu0 0.0
    %979 = vmatprep.subr.mxu0 0.0
    %980 = vmatpush1.msra.mxu0 0.0
    %981 = vmatprep.subr.mxu0 0.0
    %982 = vmatpush1.msra.mxu0 0.0
    %983 = vmatprep.subr.mxu0 0.0
    %984 = vmatpush1.msra.mxu0 0.0
    %985 = vmatprep.subr.mxu0 0.0
    %986 = vmatpush1.msra.mxu0 0.0
    %987 = vmatprep.subr.mxu0 0.0
    %988 = vmatpush1.msra.mxu0 0.0
    %989 = vmatprep.subr.mxu0 0.0
    %990 = vmatpush1.msra.mxu0 0.0
    %991 = vmatprep.subr.mxu0 0.0
    %992 = vmatpush1.msra.mxu0 0.0
    %993 = vmatprep.mubr.f32.mxu0 0.0
    %994 = vmatmul.mubr.f32.gmra.mrb[0].mxu0 %v927
    %v995 = vpop.f32.mrb[0].mxu0
    %v996 = vadd.f32 0.0, %v995
    %v997 = vpop.f32.mrb[0].mxu0
    %998 = vdwg.mxu0
    %999 = vrot.lane.b32.xlu0 %v136, 112
    %v1000 = vpop.permute.xlu0 %999
    %1001 = vrot.lane.b32.xlu0 %v136, 48
    %v1002 = vpop.permute.xlu0 %1001
    %v1003 = vsel %vm152, %v1000, 0
    %v1005 = vsel %vm152, %v1002, 0
    %1007 = vmatprep.subr.mxu0 0.0
    %1008 = vmatpush1.xpose.msra.mxu0 %v1005
    %1009 = vmatprep.subr.mxu0 0.0
    %1010 = vmatpush1.xpose.msra.mxu0 0.0
    %1011 = vmatprep.subr.mxu0 0.0
    %1012 = vmatpush1.xpose.msra.mxu0 0.0
    %1013 = vmatprep.subr.mxu0 0.0
    %1014 = vmatpush1.xpose.msra.mxu0 0.0
    %1015 = vmatprep.subr.mxu0 0.0
    %1016 = vmatpush1.xpose.msra.mxu0 0.0
    %1017 = vmatprep.subr.mxu0 0.0
    %1018 = vmatpush1.xpose.msra.mxu0 0.0
    %1019 = vmatprep.subr.mxu0 0.0
    %1020 = vmatpush1.xpose.msra.mxu0 0.0
    %1021 = vmatprep.subr.mxu0 0.0
    %1022 = vmatpush1.xpose.msra.mxu0 0.0
    %1023 = vmatprep.subr.mxu0 0.0
    %1024 = vmatpush1.xpose.msra.mxu0 0.0
    %1025 = vmatprep.subr.mxu0 0.0
    %1026 = vmatpush1.xpose.msra.mxu0 0.0
    %1027 = vmatprep.subr.mxu0 0.0
    %1028 = vmatpush1.xpose.msra.mxu0 0.0
    %1029 = vmatprep.subr.mxu0 0.0
    %1030 = vmatpush1.xpose.msra.mxu0 0.0
    %1031 = vmatprep.subr.mxu0 0.0
    %1032 = vmatpush1.xpose.msra.mxu0 0.0
    %1033 = vmatprep.subr.mxu0 0.0
    %1034 = vmatpush1.xpose.msra.mxu0 0.0
    %1035 = vmatprep.subr.mxu0 0.0
    %1036 = vmatpush1.xpose.msra.mxu0 0.0
    %1037 = vmatprep.subr.mxu0 0.0
    %1038 = vmatpush1.xpose.msra.mxu0 0.0
    %1039 = vmatprep.subr.mxu0 0.0
    %1040 = vmatpush1.xpose.msra.mxu0 0.0
    %1041 = vmatprep.subr.mxu0 0.0
    %1042 = vmatpush1.xpose.msra.mxu0 0.0
    %1043 = vmatprep.subr.mxu0 0.0
    %1044 = vmatpush1.xpose.msra.mxu0 0.0
    %1045 = vmatprep.subr.mxu0 0.0
    %1046 = vmatpush1.xpose.msra.mxu0 0.0
    %1047 = vmatprep.subr.mxu0 0.0
    %1048 = vmatpush1.xpose.msra.mxu0 0.0
    %1049 = vmatprep.subr.mxu0 0.0
    %1050 = vmatpush1.xpose.msra.mxu0 0.0
    %1051 = vmatprep.subr.mxu0 0.0
    %1052 = vmatpush1.xpose.msra.mxu0 0.0
    %1053 = vmatprep.subr.mxu0 0.0
    %1054 = vmatpush1.xpose.msra.mxu0 0.0
    %1055 = vmatprep.subr.mxu0 0.0
    %1056 = vmatpush1.xpose.msra.mxu0 0.0
    %1057 = vmatprep.subr.mxu0 0.0
    %1058 = vmatpush1.xpose.msra.mxu0 0.0
    %1059 = vmatprep.subr.mxu0 0.0
    %1060 = vmatpush1.xpose.msra.mxu0 0.0
    %1061 = vmatprep.subr.mxu0 0.0
    %1062 = vmatpush1.xpose.msra.mxu0 0.0
    %1063 = vmatprep.subr.mxu0 0.0
    %1064 = vmatpush1.xpose.msra.mxu0 0.0
    %1065 = vmatprep.subr.mxu0 0.0
    %1066 = vmatpush1.xpose.msra.mxu0 0.0
    %1067 = vmatprep.subr.mxu0 0.0
    %1068 = vmatpush1.xpose.msra.mxu0 0.0
    %1069 = vmatprep.subr.mxu0 0.0
    %1070 = vmatpush1.xpose.msra.mxu0 0.0
    %1071 = vmatprep.mubr.f32.mxu0 0.0
    %1072 = vmatmul.mubr.f32.gmra.mrb[0].mxu0 %v1003
    %v1073 = vpop.f32.mrb[0].mxu0
    %v1074 = vadd.f32 0.0, %v1073
    %v1075 = vpop.f32.mrb[0].mxu0
    %1076 = vdwg.mxu0
    %v1077 = vsel %vm227, %v1074, -inf
    %1078 = vmax.xlane.f32.xlu0 %v1077
    %v1079 = vpop.xlane.xlu0 %1078
    %v1080 = vsub.f32 %v1074, %v1079
    %v1081 = vmul.f32 %v1080, 1.442695
    %v1082 = vpow.pop %v1081
    %v1083 = vsel %vm227, %v1082, 0.0
    %1084 = vadd.xlane.f32.xlu0 %v1083
    %v1085 = vpop.xlane.xlu0 %1084
    %v1086 = vrcp.pop %v1085
    %v1087 = vmul.f32 %v1082, %v1086
    %1089 = vrot.lane.b32.xlu0 %v138, 112
    %v1090 = vpop.permute.xlu0 %1089
    %v1093 = vsel %vm227, %v1087, 0
    %1095 = vmatprep.subr.mxu0 0.0
    %1096 = vmatpush1.msra.mxu0 %v1090
    %1097 = vmatprep.subr.mxu0 0.0
    %1098 = vmatpush1.msra.mxu0 0.0
    %1099 = vmatprep.subr.mxu0 0.0
    %1100 = vmatpush1.msra.mxu0 0.0
    %1101 = vmatprep.subr.mxu0 0.0
    %1102 = vmatpush1.msra.mxu0 0.0
    %1103 = vmatprep.subr.mxu0 0.0
    %1104 = vmatpush1.msra.mxu0 0.0
    %1105 = vmatprep.subr.mxu0 0.0
    %1106 = vmatpush1.msra.mxu0 0.0
    %1107 = vmatprep.subr.mxu0 0.0
    %1108 = vmatpush1.msra.mxu0 0.0
    %1109 = vmatprep.subr.mxu0 0.0
    %1110 = vmatpush1.msra.mxu0 0.0
    %1111 = vmatprep.subr.mxu0 0.0
    %1112 = vmatpush1.msra.mxu0 0.0
    %1113 = vmatprep.subr.mxu0 0.0
    %1114 = vmatpush1.msra.mxu0 0.0
    %1115 = vmatprep.subr.mxu0 0.0
    %1116 = vmatpush1.msra.mxu0 0.0
    %1117 = vmatprep.subr.mxu0 0.0
    %1118 = vmatpush1.msra.mxu0 0.0
    %1119 = vmatprep.subr.mxu0 0.0
    %1120 = vmatpush1.msra.mxu0 0.0
    %1121 = vmatprep.subr.mxu0 0.0
    %1122 = vmatpush1.msra.mxu0 0.0
    %1123 = vmatprep.subr.mxu0 0.0
    %1124 = vmatpush1.msra.mxu0 0.0
    %1125 = vmatprep.subr.mxu0 0.0
    %1126 = vmatpush1.msra.mxu0 0.0
    %1127 = vmatprep.subr.mxu0 0.0
    %1128 = vmatpush1.msra.mxu0 0.0
    %1129 = vmatprep.subr.mxu0 0.0
    %1130 = vmatpush1.msra.mxu0 0.0
    %1131 = vmatprep.subr.mxu0 0.0
    %1132 = vmatpush1.msra.mxu0 0.0
    %1133 = vmatprep.subr.mxu0 0.0
    %1134 = vmatpush1.msra.mxu0 0.0
    %1135 = vmatprep.subr.mxu0 0.0
    %1136 = vmatpush1.msra.mxu0 0.0
    %1137 = vmatprep.subr.mxu0 0.0
    %1138 = vmatpush1.msra.mxu0 0.0
    %1139 = vmatprep.subr.mxu0 0.0
    %1140 = vmatpush1.msra.mxu0 0.0
    %1141 = vmatprep.subr.mxu0 0.0
    %1142 = vmatpush1.msra.mxu0 0.0
    %1143 = vmatprep.subr.mxu0 0.0
    %1144 = vmatpush1.msra.mxu0 0.0
    %1145 = vmatprep.subr.mxu0 0.0
    %1146 = vmatpush1.msra.mxu0 0.0
    %1147 = vmatprep.subr.mxu0 0.0
    %1148 = vmatpush1.msra.mxu0 0.0
    %1149 = vmatprep.subr.mxu0 0.0
    %1150 = vmatpush1.msra.mxu0 0.0
    %1151 = vmatprep.subr.mxu0 0.0
    %1152 = vmatpush1.msra.mxu0 0.0
    %1153 = vmatprep.subr.mxu0 0.0
    %1154 = vmatpush1.msra.mxu0 0.0
    %1155 = vmatprep.subr.mxu0 0.0
    %1156 = vmatpush1.msra.mxu0 0.0
    %1157 = vmatprep.subr.mxu0 0.0
    %1158 = vmatpush1.msra.mxu0 0.0
    %1159 = vmatprep.mubr.f32.mxu0 0.0
    %1160 = vmatmul.mubr.f32.gmra.mrb[0].mxu0 %v1093
    %v1161 = vpop.f32.mrb[0].mxu0
    %v1162 = vadd.f32 0.0, %v1161
    %v1163 = vpop.f32.mrb[0].mxu0
    %1164 = vdwg.mxu0
    %1165 = vrot.lane.b32.xlu0 %v136, 96
    %v1166 = vpop.permute.xlu0 %1165
    %1167 = vrot.lane.b32.xlu0 %v136, 32
    %v1168 = vpop.permute.xlu0 %1167
    %v1169 = vsel %vm152, %v1166, 0
    %v1171 = vsel %vm152, %v1168, 0
    %1173 = vmatprep.subr.mxu0 0.0
    %1174 = vmatpush1.xpose.msra.mxu0 %v1171
    %1175 = vmatprep.subr.mxu0 0.0
    %1176 = vmatpush1.xpose.msra.mxu0 0.0
    %1177 = vmatprep.subr.mxu0 0.0
    %1178 = vmatpush1.xpose.msra.mxu0 0.0
    %1179 = vmatprep.subr.mxu0 0.0
    %1180 = vmatpush1.xpose.msra.mxu0 0.0
    %1181 = vmatprep.subr.mxu0 0.0
    %1182 = vmatpush1.xpose.msra.mxu0 0.0
    %1183 = vmatprep.subr.mxu0 0.0
    %1184 = vmatpush1.xpose.msra.mxu0 0.0
    %1185 = vmatprep.subr.mxu0 0.0
    %1186 = vmatpush1.xpose.msra.mxu0 0.0
    %1187 = vmatprep.subr.mxu0 0.0
    %1188 = vmatpush1.xpose.msra.mxu0 0.0
    %1189 = vmatprep.subr.mxu0 0.0
    %1190 = vmatpush1.xpose.msra.mxu0 0.0
    %1191 = vmatprep.subr.mxu0 0.0
    %1192 = vmatpush1.xpose.msra.mxu0 0.0
    %1193 = vmatprep.subr.mxu0 0.0
    %1194 = vmatpush1.xpose.msra.mxu0 0.0
    %1195 = vmatprep.subr.mxu0 0.0
    %1196 = vmatpush1.xpose.msra.mxu0 0.0
    %1197 = vmatprep.subr.mxu0 0.0
    %1198 = vmatpush1.xpose.msra.mxu0 0.0
    %1199 = vmatprep.subr.mxu0 0.0
    %1200 = vmatpush1.xpose.msra.mxu0 0.0
    %1201 = vmatprep.subr.mxu0 0.0
    %1202 = vmatpush1.xpose.msra.mxu0 0.0
    %1203 = vmatprep.subr.mxu0 0.0
    %1204 = vmatpush1.xpose.msra.mxu0 0.0
    %1205 = vmatprep.subr.mxu0 0.0
    %1206 = vmatpush1.xpose.msra.mxu0 0.0
    %1207 = vmatprep.subr.mxu0 0.0
    %1208 = vmatpush1.xpose.msra.mxu0 0.0
    %1209 = vmatprep.subr.mxu0 0.0
    %1210 = vmatpush1.xpose.msra.mxu0 0.0
    %1211 = vmatprep.subr.mxu0 0.0
    %1212 = vmatpush1.xpose.msra.mxu0 0.0
    %1213 = vmatprep.subr.mxu0 0.0
    %1214 = vmatpush1.xpose.msra.mxu0 0.0
    %1215 = vmatprep.subr.mxu0 0.0
    %1216 = vmatpush1.xpose.msra.mxu0 0.0
    %1217 = vmatprep.subr.mxu0 0.0
    %1218 = vmatpush1.xpose.msra.mxu0 0.0
    %1219 = vmatprep.subr.mxu0 0.0
    %1220 = vmatpush1.xpose.msra.mxu0 0.0
    %1221 = vmatprep.subr.mxu0 0.0
    %1222 = vmatpush1.xpose.msra.mxu0 0.0
    %1223 = vmatprep.subr.mxu0 0.0
    %1224 = vmatpush1.xpose.msra.mxu0 0.0
    %1225 = vmatprep.subr.mxu0 0.0
    %1226 = vmatpush1.xpose.msra.mxu0 0.0
    %1227 = vmatprep.subr.mxu0 0.0
    %1228 = vmatpush1.xpose.msra.mxu0 0.0
    %1229 = vmatprep.subr.mxu0 0.0
    %1230 = vmatpush1.xpose.msra.mxu0 0.0
    %1231 = vmatprep.subr.mxu0 0.0
    %1232 = vmatpush1.xpose.msra.mxu0 0.0
    %1233 = vmatprep.subr.mxu0 0.0
    %1234 = vmatpush1.xpose.msra.mxu0 0.0
    %1235 = vmatprep.subr.mxu0 0.0
    %1236 = vmatpush1.xpose.msra.mxu0 0.0
    %1237 = vmatprep.mubr.f32.mxu0 0.0
    %1238 = vmatmul.mubr.f32.gmra.mrb[0].mxu0 %v1169
    %v1239 = vpop.f32.mrb[0].mxu0
    %v1240 = vadd.f32 0.0, %v1239
    %v1241 = vpop.f32.mrb[0].mxu0
    %1242 = vdwg.mxu0
    %v1243 = vsel %vm227, %v1240, -inf
    %1244 = vmax.xlane.f32.xlu0 %v1243
    %v1245 = vpop.xlane.xlu0 %1244
    %v1246 = vsub.f32 %v1240, %v1245
    %v1247 = vmul.f32 %v1246, 1.442695
    %v1248 = vpow.pop %v1247
    %v1249 = vsel %vm227, %v1248, 0.0
    %1250 = vadd.xlane.f32.xlu0 %v1249
    %v1251 = vpop.xlane.xlu0 %1250
    %v1252 = vrcp.pop %v1251
    %v1253 = vmul.f32 %v1248, %v1252
    %1254 = vrot.lane.b32.xlu0 %v138, 96
    %v1255 = vpop.permute.xlu0 %1254
    %v1258 = vsel %vm227, %v1253, 0
    %1260 = vmatprep.subr.mxu0 0.0
    %1261 = vmatpush1.msra.mxu0 %v1255
    %1262 = vmatprep.subr.mxu0 0.0
    %1263 = vmatpush1.msra.mxu0 0.0
    %1264 = vmatprep.subr.mxu0 0.0
    %1265 = vmatpush1.msra.mxu0 0.0
    %1266 = vmatprep.subr.mxu0 0.0
    %1267 = vmatpush1.msra.mxu0 0.0
    %1268 = vmatprep.subr.mxu0 0.0
    %1269 = vmatpush1.msra.mxu0 0.0
    %1270 = vmatprep.subr.mxu0 0.0
    %1271 = vmatpush1.msra.mxu0 0.0
    %1272 = vmatprep.subr.mxu0 0.0
    %1273 = vmatpush1.msra.mxu0 0.0
    %1274 = vmatprep.subr.mxu0 0.0
    %1275 = vmatpush1.msra.mxu0 0.0
    %1276 = vmatprep.subr.mxu0 0.0
    %1277 = vmatpush1.msra.mxu0 0.0
    %1278 = vmatprep.subr.mxu0 0.0
    %1279 = vmatpush1.msra.mxu0 0.0
    %1280 = vmatprep.subr.mxu0 0.0
    %1281 = vmatpush1.msra.mxu0 0.0
    %1282 = vmatprep.subr.mxu0 0.0
    %1283 = vmatpush1.msra.mxu0 0.0
    %1284 = vmatprep.subr.mxu0 0.0
    %1285 = vmatpush1.msra.mxu0 0.0
    %1286 = vmatprep.subr.mxu0 0.0
    %1287 = vmatpush1.msra.mxu0 0.0
    %1288 = vmatprep.subr.mxu0 0.0
    %1289 = vmatpush1.msra.mxu0 0.0
    %1290 = vmatprep.subr.mxu0 0.0
    %1291 = vmatpush1.msra.mxu0 0.0
    %1292 = vmatprep.subr.mxu0 0.0
    %1293 = vmatpush1.msra.mxu0 0.0
    %1294 = vmatprep.subr.mxu0 0.0
    %1295 = vmatpush1.msra.mxu0 0.0
    %1296 = vmatprep.subr.mxu0 0.0
    %1297 = vmatpush1.msra.mxu0 0.0
    %1298 = vmatprep.subr.mxu0 0.0
    %1299 = vmatpush1.msra.mxu0 0.0
    %1300 = vmatprep.subr.mxu0 0.0
    %1301 = vmatpush1.msra.mxu0 0.0
    %1302 = vmatprep.subr.mxu0 0.0
    %1303 = vmatpush1.msra.mxu0 0.0
    %1304 = vmatprep.subr.mxu0 0.0
    %1305 = vmatpush1.msra.mxu0 0.0
    %1306 = vmatprep.subr.mxu0 0.0
    %1307 = vmatpush1.msra.mxu0 0.0
    %1308 = vmatprep.subr.mxu0 0.0
    %1309 = vmatpush1.msra.mxu0 0.0
    %1310 = vmatprep.subr.mxu0 0.0
    %1311 = vmatpush1.msra.mxu0 0.0
    %1312 = vmatprep.subr.mxu0 0.0
    %1313 = vmatpush1.msra.mxu0 0.0
    %1314 = vmatprep.subr.mxu0 0.0
    %1315 = vmatpush1.msra.mxu0 0.0
    %1316 = vmatprep.subr.mxu0 0.0
    %1317 = vmatpush1.msra.mxu0 0.0
    %1318 = vmatprep.subr.mxu0 0.0
    %1319 = vmatpush1.msra.mxu0 0.0
    %1320 = vmatprep.subr.mxu0 0.0
    %1321 = vmatpush1.msra.mxu0 0.0
    %1322 = vmatprep.subr.mxu0 0.0
    %1323 = vmatpush1.msra.mxu0 0.0
    %1324 = vmatprep.mubr.f32.mxu0 0.0
    %1325 = vmatmul.mubr.f32.gmra.mrb[0].mxu0 %v1258
    %v1326 = vpop.f32.mrb[0].mxu0
    %v1327 = vadd.f32 0.0, %v1326
    %v1328 = vpop.f32.mrb[0].mxu0
    %1329 = vdwg.mxu0
    %1330 = vrot.lane.b32.xlu0 %v136, 80
    %v1331 = vpop.permute.xlu0 %1330
    %1332 = vrot.lane.b32.xlu0 %v136, 16
    %v1333 = vpop.permute.xlu0 %1332
    %v1334 = vsel %vm152, %v1331, 0
    %v1336 = vsel %vm152, %v1333, 0
    %1338 = vmatprep.subr.mxu0 0.0
    %1339 = vmatpush1.xpose.msra.mxu0 %v1336
    %1340 = vmatprep.subr.mxu0 0.0
    %1341 = vmatpush1.xpose.msra.mxu0 0.0
    %1342 = vmatprep.subr.mxu0 0.0
    %1343 = vmatpush1.xpose.msra.mxu0 0.0
    %1344 = vmatprep.subr.mxu0 0.0
    %1345 = vmatpush1.xpose.msra.mxu0 0.0
    %1346 = vmatprep.subr.mxu0 0.0
    %1347 = vmatpush1.xpose.msra.mxu0 0.0
    %1348 = vmatprep.subr.mxu0 0.0
    %1349 = vmatpush1.xpose.msra.mxu0 0.0
    %1350 = vmatprep.subr.mxu0 0.0
    %1351 = vmatpush1.xpose.msra.mxu0 0.0
    %1352 = vmatprep.subr.mxu0 0.0
    %1353 = vmatpush1.xpose.msra.mxu0 0.0
    %1354 = vmatprep.subr.mxu0 0.0
    %1355 = vmatpush1.xpose.msra.mxu0 0.0
    %1356 = vmatprep.subr.mxu0 0.0
    %1357 = vmatpush1.xpose.msra.mxu0 0.0
    %1358 = vmatprep.subr.mxu0 0.0
    %1359 = vmatpush1.xpose.msra.mxu0 0.0
    %1360 = vmatprep.subr.mxu0 0.0
    %1361 = vmatpush1.xpose.msra.mxu0 0.0
    %1362 = vmatprep.subr.mxu0 0.0
    %1363 = vmatpush1.xpose.msra.mxu0 0.0
    %1364 = vmatprep.subr.mxu0 0.0
    %1365 = vmatpush1.xpose.msra.mxu0 0.0
    %1366 = vmatprep.subr.mxu0 0.0
    %1367 = vmatpush1.xpose.msra.mxu0 0.0
    %1368 = vmatprep.subr.mxu0 0.0
    %1369 = vmatpush1.xpose.msra.mxu0 0.0
    %1370 = vmatprep.subr.mxu0 0.0
    %1371 = vmatpush1.xpose.msra.mxu0 0.0
    %1372 = vmatprep.subr.mxu0 0.0
    %1373 = vmatpush1.xpose.msra.mxu0 0.0
    %1374 = vmatprep.subr.mxu0 0.0
    %1375 = vmatpush1.xpose.msra.mxu0 0.0
    %1376 = vmatprep.subr.mxu0 0.0
    %1377 = vmatpush1.xpose.msra.mxu0 0.0
    %1378 = vmatprep.subr.mxu0 0.0
    %1379 = vmatpush1.xpose.msra.mxu0 0.0
    %1380 = vmatprep.subr.mxu0 0.0
    %1381 = vmatpush1.xpose.msra.mxu0 0.0
    %1382 = vmatprep.subr.mxu0 0.0
    %1383 = vmatpush1.xpose.msra.mxu0 0.0
    %1384 = vmatprep.subr.mxu0 0.0
    %1385 = vmatpush1.xpose.msra.mxu0 0.0
    %1386 = vmatprep.subr.mxu0 0.0
    %1387 = vmatpush1.xpose.msra.mxu0 0.0
    %1388 = vmatprep.subr.mxu0 0.0
    %1389 = vmatpush1.xpose.msra.mxu0 0.0
    %1390 = vmatprep.subr.mxu0 0.0
    %1391 = vmatpush1.xpose.msra.mxu0 0.0
    %1392 = vmatprep.subr.mxu0 0.0
    %1393 = vmatpush1.xpose.msra.mxu0 0.0
    %1394 = vmatprep.subr.mxu0 0.0
    %1395 = vmatpush1.xpose.msra.mxu0 0.0
    %1396 = vmatprep.subr.mxu0 0.0
    %1397 = vmatpush1.xpose.msra.mxu0 0.0
    %1398 = vmatprep.subr.mxu0 0.0
    %1399 = vmatpush1.xpose.msra.mxu0 0.0
    %1400 = vmatprep.subr.mxu0 0.0
    %1401 = vmatpush1.xpose.msra.mxu0 0.0
    %1402 = vmatprep.mubr.f32.mxu0 0.0
    %1403 = vmatmul.mubr.f32.gmra.mrb[0].mxu0 %v1334
    %v1404 = vpop.f32.mrb[0].mxu0
    %v1405 = vadd.f32 0.0, %v1404
    %v1406 = vpop.f32.mrb[0].mxu0
    %1407 = vdwg.mxu0
    %v1408 = vsel %vm227, %v1405, -inf
    %1409 = vmax.xlane.f32.xlu0 %v1408
    %v1410 = vpop.xlane.xlu0 %1409
    %v1411 = vsub.f32 %v1405, %v1410
    %v1412 = vmul.f32 %v1411, 1.442695
    %v1413 = vpow.pop %v1412
    %v1414 = vsel %vm227, %v1413, 0.0
    %1415 = vadd.xlane.f32.xlu0 %v1414
    %v1416 = vpop.xlane.xlu0 %1415
    %v1417 = vrcp.pop %v1416
    %v1418 = vmul.f32 %v1413, %v1417
    %1419 = vrot.lane.b32.xlu0 %v138, 80
    %v1420 = vpop.permute.xlu0 %1419
    %v1423 = vsel %vm227, %v1418, 0
    %1425 = vmatprep.subr.mxu0 0.0
    %1426 = vmatpush1.msra.mxu0 %v1420
    %1427 = vmatprep.subr.mxu0 0.0
    %1428 = vmatpush1.msra.mxu0 0.0
    %1429 = vmatprep.subr.mxu0 0.0
    %1430 = vmatpush1.msra.mxu0 0.0
    %1431 = vmatprep.subr.mxu0 0.0
    %1432 = vmatpush1.msra.mxu0 0.0
    %1433 = vmatprep.subr.mxu0 0.0
    %1434 = vmatpush1.msra.mxu0 0.0
    %1435 = vmatprep.subr.mxu0 0.0
    %1436 = vmatpush1.msra.mxu0 0.0
    %1437 = vmatprep.subr.mxu0 0.0
    %1438 = vmatpush1.msra.mxu0 0.0
    %1439 = vmatprep.subr.mxu0 0.0
    %1440 = vmatpush1.msra.mxu0 0.0
    %1441 = vmatprep.subr.mxu0 0.0
    %1442 = vmatpush1.msra.mxu0 0.0
    %1443 = vmatprep.subr.mxu0 0.0
    %1444 = vmatpush1.msra.mxu0 0.0
    %1445 = vmatprep.subr.mxu0 0.0
    %1446 = vmatpush1.msra.mxu0 0.0
    %1447 = vmatprep.subr.mxu0 0.0
    %1448 = vmatpush1.msra.mxu0 0.0
    %1449 = vmatprep.subr.mxu0 0.0
    %1450 = vmatpush1.msra.mxu0 0.0
    %1451 = vmatprep.subr.mxu0 0.0
    %1452 = vmatpush1.msra.mxu0 0.0
    %1453 = vmatprep.subr.mxu0 0.0
    %1454 = vmatpush1.msra.mxu0 0.0
    %1455 = vmatprep.subr.mxu0 0.0
    %1456 = vmatpush1.msra.mxu0 0.0
    %1457 = vmatprep.subr.mxu0 0.0
    %1458 = vmatpush1.msra.mxu0 0.0
    %1459 = vmatprep.subr.mxu0 0.0
    %1460 = vmatpush1.msra.mxu0 0.0
    %1461 = vmatprep.subr.mxu0 0.0
    %1462 = vmatpush1.msra.mxu0 0.0
    %1463 = vmatprep.subr.mxu0 0.0
    %1464 = vmatpush1.msra.mxu0 0.0
    %1465 = vmatprep.subr.mxu0 0.0
    %1466 = vmatpush1.msra.mxu0 0.0
    %1467 = vmatprep.subr.mxu0 0.0
    %1468 = vmatpush1.msra.mxu0 0.0
    %1469 = vmatprep.subr.mxu0 0.0
    %1470 = vmatpush1.msra.mxu0 0.0
    %1471 = vmatprep.subr.mxu0 0.0
    %1472 = vmatpush1.msra.mxu0 0.0
    %1473 = vmatprep.subr.mxu0 0.0
    %1474 = vmatpush1.msra.mxu0 0.0
    %1475 = vmatprep.subr.mxu0 0.0
    %1476 = vmatpush1.msra.mxu0 0.0
    %1477 = vmatprep.subr.mxu0 0.0
    %1478 = vmatpush1.msra.mxu0 0.0
    %1479 = vmatprep.subr.mxu0 0.0
    %1480 = vmatpush1.msra.mxu0 0.0
    %1481 = vmatprep.subr.mxu0 0.0
    %1482 = vmatpush1.msra.mxu0 0.0
    %1483 = vmatprep.subr.mxu0 0.0
    %1484 = vmatpush1.msra.mxu0 0.0
    %1485 = vmatprep.subr.mxu0 0.0
    %1486 = vmatpush1.msra.mxu0 0.0
    %1487 = vmatprep.subr.mxu0 0.0
    %1488 = vmatpush1.msra.mxu0 0.0
    %1489 = vmatprep.mubr.f32.mxu0 0.0
    %1490 = vmatmul.mubr.f32.gmra.mrb[0].mxu0 %v1423
    %v1491 = vpop.f32.mrb[0].mxu0
    %v1492 = vadd.f32 0.0, %v1491
    %v1493 = vpop.f32.mrb[0].mxu0
    %1494 = vdwg.mxu0
    %1496 = vrot.lane.b32.xlu0 %v1162, 16
    %v1497 = vpop.permute.xlu0 %1496
    %1500 = vrot.lane.b32.xlu0 %v1327, 32
    %v1501 = vpop.permute.xlu0 %1500
    %1504 = vrot.lane.b32.xlu0 %v1492, 48
    %v1505 = vpop.permute.xlu0 %1504
    %v1507 = vsel %vm152, %v996, %v1497
    %v1508 = vsel %vm821, %v1507, %v1501
    %v1509 = vsel %vm823, %v1508, %v1505
    %1510 = vrot.lane.b32.xlu0 %v1087, 8
    %v1511 = vpop.permute.xlu0 %1510
    %1513 = vrot.lane.b32.xlu0 %v1253, 16
    %v1514 = vpop.permute.xlu0 %1513
    %1516 = vrot.lane.b32.xlu0 %v1418, 24
    %v1517 = vpop.permute.xlu0 %1516
    %v1519 = vsel %vm227, %v925, %v1511
    %v1520 = vsel %vm152, %v1519, %v1514
    %v1521 = vsel %vm836, %v1520, %v1517
    %v1522 = vlaneseq
    %v1523 = vshrl.u32 %v1522, 7
    %v1524 = vsub.s32 0, %v1523
    %v1525 = vrot.slane %v148, %v1524
    %vm1526 = vcmask 523264
    %v1528 = vsel %vm1526, %v824, 0
    %v1531 = vsel %vm1526, %v1509, 0
    %1533 = vmatprep.subr.mxu0 0.0
    %1534 = vmatpush1.msra.mxu0 %v140
    %1535 = vmatprep.subr.mxu0 0.0
    %1536 = vmatpush1.msra.mxu0 %v141
    %1537 = vmatprep.subr.mxu0 0.0
    %1538 = vmatpush1.msra.mxu0 %v142
    %1539 = vmatprep.subr.mxu0 0.0
    %1540 = vmatpush1.msra.mxu0 %v143
    %1541 = vmatprep.subr.mxu0 0.0
    %1542 = vmatpush1.msra.mxu0 %v144
    %1543 = vmatprep.subr.mxu0 0.0
    %1544 = vmatpush1.msra.mxu0 %v145
    %1545 = vmatprep.subr.mxu0 0.0
    %1546 = vmatpush1.msra.mxu0 %v146
    %1547 = vmatprep.subr.mxu0 0.0
    %1548 = vmatpush1.msra.mxu0 %v147
    %1549 = vmatprep.subr.mxu0 0.0
    %1550 = vmatpush1.msra.mxu0 0.0
    %1551 = vmatprep.subr.mxu0 0.0
    %1552 = vmatpush1.msra.mxu0 0.0
    %1553 = vmatprep.subr.mxu0 0.0
    %1554 = vmatpush1.msra.mxu0 0.0
    %1555 = vmatprep.subr.mxu0 0.0
    %1556 = vmatpush1.msra.mxu0 0.0
    %1557 = vmatprep.subr.mxu0 0.0
    %1558 = vmatpush1.msra.mxu0 0.0
    %1559 = vmatprep.subr.mxu0 0.0
    %1560 = vmatpush1.msra.mxu0 0.0
    %1561 = vmatprep.subr.mxu0 0.0
    %1562 = vmatpush1.msra.mxu0 0.0
    %1563 = vmatprep.subr.mxu0 0.0
    %1564 = vmatpush1.msra.mxu0 0.0
    %1565 = vmatprep.subr.mxu0 0.0
    %1566 = vmatpush1.msra.mxu0 0.0
    %1567 = vmatprep.subr.mxu0 0.0
    %1568 = vmatpush1.msra.mxu0 0.0
    %1569 = vmatprep.subr.mxu0 0.0
    %1570 = vmatpush1.msra.mxu0 0.0
    %1571 = vmatprep.subr.mxu0 0.0
    %1572 = vmatpush1.msra.mxu0 0.0
    %1573 = vmatprep.subr.mxu0 0.0
    %1574 = vmatpush1.msra.mxu0 0.0
    %1575 = vmatprep.subr.mxu0 0.0
    %1576 = vmatpush1.msra.mxu0 0.0
    %1577 = vmatprep.subr.mxu0 0.0
    %1578 = vmatpush1.msra.mxu0 0.0
    %1579 = vmatprep.subr.mxu0 0.0
    %1580 = vmatpush1.msra.mxu0 0.0
    %1581 = vmatprep.subr.mxu0 0.0
    %1582 = vmatpush1.msra.mxu0 0.0
    %1583 = vmatprep.subr.mxu0 0.0
    %1584 = vmatpush1.msra.mxu0 0.0
    %1585 = vmatprep.subr.mxu0 0.0
    %1586 = vmatpush1.msra.mxu0 0.0
    %1587 = vmatprep.subr.mxu0 0.0
    %1588 = vmatpush1.msra.mxu0 0.0
    %1589 = vmatprep.subr.mxu0 0.0
    %1590 = vmatpush1.msra.mxu0 0.0
    %1591 = vmatprep.subr.mxu0 0.0
    %1592 = vmatpush1.msra.mxu0 0.0
    %1593 = vmatprep.subr.mxu0 0.0
    %1594 = vmatpush1.msra.mxu0 0.0
    %1595 = vmatprep.subr.mxu0 0.0
    %1596 = vmatpush1.msra.mxu0 0.0
    %1597 = vmatprep.mubr.f32.mxu0 0.0
    %1598 = vmatmul.mubr.f32.gmra.mrb[0].mxu0 %v1528
    %v1599 = vpop.f32.mrb[0].mxu0
    %v1600 = vadd.f32 %v1525, %v1599
    %v1601 = vpop.f32.mrb[0].mxu0
    %1602 = vmatprep.mubr.f32.mxu0 0.0
    %1603 = vmatmul.mubr.f32.gmra.mrb[0].mxu0 %v1531
    %v1604 = vpop.f32.mrb[0].mxu0
    %v1605 = vadd.f32 %v1525, %v1604
    %v1606 = vpop.f32.mrb[0].mxu0
    %1607 = vdwg.mxu0
    %1610 = vrot.lane.b32.xlu0 %v837, 32
    %v1611 = vpop.permute.xlu0 %1610
    %1612 = vrot.lane.b32.xlu0 %v1521, 32
    %v1613 = vpop.permute.xlu0 %1612
    %v1616 = vsel %vm821, %v1600, %v1611
    %v1617 = vsel %vm821, %v1605, %v1613
    %1618 = vst.msk [vmem:[#allocation5] sm:$0xff] %vm1526, %v1616
    %1619 = vst.msk [vmem:[#allocation5 + $0x8] sm:$0xff] %vm1526, %v1617
    // Predicated region
    $region18: #{tpu_custom_call.1} parent=1 // pred_check
      _
    $region19: #{tpu_custom_call.1} parent=1 // pred_check_branch
      %1621 = sbr.rel (0) target = $region21
    $region20: #{tpu_custom_call.1} parent=1 // pred_region
      %s1623 = ssub.s32 256, 256
      %1624 = vsyncadd [#allocation4], %s1623
      %s1625 = sshll.u32 [#allocation5], 4
      %s1626 = int_to_ptr.vmem [resolvable:$true] %s1625
      %1631 = dma.vmem_to_hbm [thread:$0]  %s1626, 256, %s3, [#allocation4], 128, 128, 8
    $region21: #{tpu_custom_call.1} parent=1 // pred_fallthru
      _
    // Predicated region
    $region22: #{tpu_custom_call.1} parent=1 // pred_check
      _
    $region23: #{tpu_custom_call.1} parent=1 // pred_check_branch
      %1633 = sbr.rel (0) target = $region25
    $region24: #{tpu_custom_call.1} parent=1 // pred_region
      %1634 = dma.done [#allocation4], 256
    $region25: #{tpu_custom_call.1} parent=1 // pred_fallthru
      _
    %1635 = vsyncpa [#allocation3], 1
    %1636 = vsyncpa [#allocation4], 1

</llo_original>
